<compile_context>
chip_gen: v6e
topology: v6e:2x2x1
jax: 0.10.0
libtpu: 0.0.40
codegen_flags: <defaults>
</compile_context>

<pallas_src>
import functools

import jax
import jax.numpy as jnp
import numpy as np
from jax.experimental import pallas as pl
from jax.experimental.pallas import tpu as pltpu

NEG_INF = -1e30


# ----------------------------------------------------------------------------- kernel
def attn_decoder_kernel(
    ids_ref,       # (B, 1)          int32  token ids
    hid_ref,       # (L, B, H)       f32
    enc_ref,       # (B, H, ML)      wdt    lane-dense encoder outputs
    emb_ref,       # (V, H)          f32    embedding table
    attn_w_ref,    # (2H, ML)        wdt
    comb_w_ref,    # (2H, H)         wdt
    wih_ref,       # (L, H, 3*Hp)    wdt    gate-padded: [r|z|n], each gate in its own 128-lane tile
    whh_ref,       # (L, H, 3*Hp)    wdt
    gru_b_ref,     # (L, 2, 1, 3*Hp) f32    [:,0]=b_ih, [:,1]=b_hh (gate-padded)
    outw_ref,      # (H, Vp)         wdt
    bias_ref,      # (3, W)          f32    rows [attn_b | comb_b | out_b (pads = -1e30)]
    logits_ref,    # out (B, Vp)     f32
    newhid_ref,    # out (L, B, H)   f32
    *,
    approx_recip: bool,
):
    B = ids_ref.shape[0]
    V = emb_ref.shape[0]
    H = comb_w_ref.shape[1]
    L = hid_ref.shape[0]
    ML = attn_w_ref.shape[1]
    Hp = wih_ref.shape[2] // 3
    Vp = outw_ref.shape[1]
    wdt = attn_w_ref.dtype            # MXU operand dtype (bf16 perf path / f32 check path)

    hid = hid_ref[...]                # (L, B, H) f32
    attn_b = bias_ref[0:1, :ML]
    comb_b = bias_ref[1:2, :H]
    out_b = bias_ref[2:3, :Vp]

    # ---- embedding lookup as an exact one-hot MXU matmul (f32) -------------------
    # TODO(synk): nn.Dropout(p=0.1) applied in eval mode (identity); training RNG dropout
    #             is not reproduced.
    ids = ids_ref[...]                                                     # (B, 1) int32
    onehot = (jax.lax.broadcasted_iota(jnp.int32, (B, V), 1) == ids).astype(jnp.float32)
    emb = jnp.dot(onehot, emb_ref[...], preferred_element_type=jnp.float32)  # (B, H) f32

    h_top = hid[L - 1]                                                     # (B, H) f32

    # ---- attn_weights = softmax(attn(cat(embedded[0], hidden[-1])), dim=1) -------
    # (the two small concats are the only remaining cross-lane ops on this path)
    cat_eh = jnp.concatenate([emb, h_top], axis=1).astype(wdt)             # (B, 2H)
    scores = jnp.dot(cat_eh, attn_w_ref[...], preferred_element_type=jnp.float32) + attn_b
    m = jnp.max(scores, axis=1, keepdims=True)
    e = jnp.exp(scores - m)
    denom = jnp.sum(e, axis=1, keepdims=True)
    if approx_recip:
        probs = e * pl.reciprocal(denom, approx=True)                      # EUP (perf path)
    else:
        probs = e / denom                                                  # exact (f32 check)

    # ---- attn_applied = bmm(probs, enc): VPU broadcast-mul + lane reduce ---------
    # One multiply + one XLU lane-sum over ML instead of B serial M=1 MXU pushes.
    attn_applied = jnp.sum(probs[:, None, :] * enc_ref[...], axis=-1)      # (B, H) f32

    # ---- attn_combine(cat(embedded, attn_applied)) -> ReLU ------------------------
    cat_ea = jnp.concatenate([emb, attn_applied], axis=1).astype(wdt)      # (B, 2H)
    x = jnp.dot(cat_ea, comb_w_ref[...], preferred_element_type=jnp.float32) + comb_b
    x = jnp.maximum(x, 0.0)                                                # (B, H) f32

    # ---- multi-layer GRU, single time step (gate order r, z, n) -------------------
    # Hidden-path matmuls have no serial dependence -> batch them before the loop.
    gh_all = jnp.einsum("lbh,lhk->lbk", hid.astype(wdt), whh_ref[...],
                        preferred_element_type=jnp.float32)                # (L, B, 3Hp)

    new_h = []
    for l in range(L):
        h_prev = hid[l]                                                    # (B, H) f32
        gi = (
            jnp.dot(x.astype(wdt), wih_ref[l], preferred_element_type=jnp.float32)
            + gru_b_ref[l, 0]
        )                                                                  # (B, 3Hp)
        gh = gh_all[l] + gru_b_ref[l, 1]                                   # (B, 3Hp)
        # Gate slices are 128-lane-tile aligned (offsets 0, Hp, 2Hp): no lane rotates.
        r = jax.nn.sigmoid(gi[:, :Hp] + gh[:, :Hp])
        z = jax.nn.sigmoid(gi[:, Hp:2 * Hp] + gh[:, Hp:2 * Hp])
        n = jnp.tanh(gi[:, 2 * Hp:] + r * gh[:, 2 * Hp:])
        h_new = (1.0 - z[:, :H]) * n[:, :H] + z[:, :H] * h_prev            # (B, H)
        new_h.append(h_new)
        x = h_new

    newhid_ref[...] = jnp.stack(new_h, axis=0)                             # one coalesced store

    # ---- output projection (lane-dense Vp; pad columns carry -1e30 bias) ----------
    logits_ref[...] = (
        jnp.dot(x.astype(wdt), outw_ref[...], preferred_element_type=jnp.float32) + out_b
    )


# ----------------------------------------------------------------------------- prepack (hoisted)
def prepack_params(params, *, weight_dtype=jnp.bfloat16):
    """One-time weight packing (done at weight-load time, NOT per decode step)."""
    L, H, _ = params["gru_w_ih"].shape
    V = params["out_w"].shape[1]
    ML = params["attn_w"].shape[1]
    Hp = pl.cdiv(H, 128) * 128            # per-gate lane-tile width
    Vp = pl.cdiv(V, 128) * 128            # lane-dense logits width

    def pad_gates(w):                     # (..., 3H) -> (..., 3Hp), gate g at lane g*Hp
        gates = [
            jnp.pad(w[..., g * H:(g + 1) * H],
                    [(0, 0)] * (w.ndim - 1) + [(0, Hp - H)])
            for g in range(3)
        ]
        return jnp.concatenate(gates, axis=-1)

    gru_b = jnp.stack([pad_gates(params["gru_b_ih"]),
                       pad_gates(params["gru_b_hh"])], axis=1)             # (L, 2, 1, 3Hp)

    # out_b padded with a large negative so padded logits can never win an argmax.
    out_b = jnp.concatenate(
        [params["out_b"], jnp.full((1, Vp - V), NEG_INF, jnp.float32)], axis=1)

    W = max(ML, H, Vp)

    def pad_row(b):
        return jnp.pad(b, ((0, 0), (0, W - b.shape[1])))

    bias_pack = jnp.concatenate(
        [pad_row(params["attn_b"]), pad_row(params["comb_b"]), pad_row(out_b)], axis=0)

    return dict(
        emb_table=params["emb_table"].astype(jnp.float32),                 # exact gather path
        attn_w=params["attn_w"].astype(weight_dtype),                      # (2H, ML)
        comb_w=params["comb_w"].astype(weight_dtype),                      # (2H, H)
        w_ih=pad_gates(params["gru_w_ih"]).astype(weight_dtype),           # (L, H, 3Hp)
        w_hh=pad_gates(params["gru_w_hh"]).astype(weight_dtype),           # (L, H, 3Hp)
        gru_b=gru_b.astype(jnp.float32),                                   # (L, 2, 1, 3Hp)
        out_w=jnp.pad(params["out_w"], ((0, 0), (0, Vp - V))).astype(weight_dtype),  # (H, Vp)
        bias_pack=bias_pack.astype(jnp.float32),                           # (3, W)
    )


def prepack_encoder(encoder_outputs, *, weight_dtype=jnp.bfloat16):
    """Once per sequence: (ML, B, H) -> lane-dense (B, H, ML) in operand dtype."""
    return jnp.transpose(encoder_outputs, (1, 2, 0)).astype(weight_dtype)


# ----------------------------------------------------------------------------- per-step fn
def make_step_fn(*, approx_recip=True):
    kernel = functools.partial(attn_decoder_kernel, approx_recip=approx_recip)
    vmem = pl.BlockSpec(memory_space=pltpu.MemorySpace.VMEM)

    @jax.jit
    def step(packed, input_ids_2d, hidden, enc_bht):
        B = input_ids_2d.shape[0]
        L, _, H = hidden.shape
        Vp = packed["out_w"].shape[1]
        args = (input_ids_2d, hidden, enc_bht, packed["emb_table"], packed["attn_w"],
                packed["comb_w"], packed["w_ih"], packed["w_hh"], packed["gru_b"],
                packed["out_w"], packed["bias_pack"])
        # Whole problem (<0.5 MiB) is VMEM-resident; no grid, no tiling needed.
        return pl.pallas_call(
            kernel,
            out_shape=(jax.ShapeDtypeStruct((B, Vp), jnp.float32),
                       jax.ShapeDtypeStruct((L, B, H), jnp.float32)),
            in_specs=[vmem] * len(args),
            out_specs=(vmem, vmem),
        )(*args)

    return step


# ----------------------------------------------------------------------------- params
def init_params(key, hidden_size, vocab_size, num_layers, max_length):
    H, V, L, ML = hidden_size, vocab_size, num_layers, max_length
    ks = iter(jax.random.split(key, 12))

    def u(k, shape, scale):
        return jax.random.uniform(k, shape, jnp.float32, -scale, scale)

    emb_table = jax.random.normal(next(ks), (V, H), jnp.float32)

    s2 = 1.0 / np.sqrt(2 * H)
    attn_w = u(next(ks), (2 * H, ML), s2)        # Linear(2H -> ML), stored (in, out)
    attn_b = u(next(ks), (1, ML), s2)
    comb_w = u(next(ks), (2 * H, H), s2)         # Linear(2H -> H)
    comb_b = u(next(ks), (1, H), s2)

    s1 = 1.0 / np.sqrt(H)
    gru_w_ih = u(next(ks), (L, H, 3 * H), s1)    # columns [r | z | n]
    gru_w_hh = u(next(ks), (L, H, 3 * H), s1)
    gru_b_ih = u(next(ks), (L, 1, 3 * H), s1)
    gru_b_hh = u(next(ks), (L, 1, 3 * H), s1)

    out_w = u(next(ks), (H, V), s1)              # Linear(H -> V)
    out_b = u(next(ks), (1, V), s1)

    return dict(
        emb_table=emb_table,
        attn_w=attn_w, attn_b=attn_b,
        comb_w=comb_w, comb_b=comb_b,
        gru_w_ih=gru_w_ih, gru_w_hh=gru_w_hh,
        gru_b_ih=gru_b_ih, gru_b_hh=gru_b_hh,
        out_w=out_w, out_b=out_b,
    )


# ----------------------------------------------------------------------------- pure-JAX reference
def reference_forward(params, input_ids, hidden, encoder_outputs):
    L, _, H = hidden.shape
    emb = jnp.take(params["emb_table"], input_ids, axis=0)
    h_top = hidden[-1]
    scores = jnp.concatenate([emb, h_top], axis=1) @ params["attn_w"] + params["attn_b"]
    attn_w = jax.nn.softmax(scores, axis=1)
    enc_bth = jnp.transpose(encoder_outputs, (1, 0, 2))                 # (B, ML, H)
    attn_applied = jnp.einsum("bt,bth->bh", attn_w, enc_bth)
    x = jnp.maximum(
        jnp.concatenate([emb, attn_applied], axis=1) @ params["comb_w"] + params["comb_b"],
        0.0,
    )
    new_h = []
    for l in range(L):
        h_prev = hidden[l]
        gi = x @ params["gru_w_ih"][l] + params["gru_b_ih"][l]
        gh = h_prev @ params["gru_w_hh"][l] + params["gru_b_hh"][l]
        r = jax.nn.sigmoid(gi[:, :H] + gh[:, :H])
        z = jax.nn.sigmoid(gi[:, H:2 * H] + gh[:, H:2 * H])
        n = jnp.tanh(gi[:, 2 * H:] + r * gh[:, 2 * H:])
        h_new = (1.0 - z) * n + z * h_prev
        new_h.append(h_new)
        x = h_new
    logits = x @ params["out_w"] + params["out_b"]
    return logits, jnp.stack(new_h)


# ----------------------------------------------------------------------------- main
if __name__ == "__main__":
    HIDDEN = 32
    VOCAB = 64
    LAYERS = 2
    MAX_LENGTH = 128
    BATCH = 8

    key = jax.random.PRNGKey(0)
    kp, ki, kh, ke = jax.random.split(key, 4)

    params = init_params(kp, HIDDEN, VOCAB, LAYERS, MAX_LENGTH)
    input_ids = jax.random.randint(ki, (BATCH,), 0, VOCAB, dtype=jnp.int32)
    hidden = jax.random.normal(kh, (LAYERS, BATCH, HIDDEN), jnp.float32) * 0.1
    encoder_outputs = jax.random.normal(ke, (MAX_LENGTH, BATCH, HIDDEN), jnp.float32) * 0.1

    ids2d = input_ids.reshape(BATCH, 1)          # kernel gather operand, built once

    ref_logits, ref_hidden = reference_forward(params, input_ids, hidden, encoder_outputs)

    # 1) strict all-f32 kernel check (exact softmax divide, tight tolerance)
    packed32 = prepack_params(params, weight_dtype=jnp.float32)
    enc32 = prepack_encoder(encoder_outputs, weight_dtype=jnp.float32)
    step32 = make_step_fn(approx_recip=False)
    logits32_p, hidden32 = step32(packed32, ids2d, hidden, enc32)
    jax.block_until_ready((logits32_p, hidden32))
    np.testing.assert_allclose(np.asarray(logits32_p)[:, :VOCAB], np.asarray(ref_logits),
                               rtol=2e-3, atol=2e-3)
    np.testing.assert_allclose(np.asarray(hidden32), np.asarray(ref_hidden),
                               rtol=2e-3, atol=2e-3)

    # 2) bf16-MXU perf path: prepack ONCE, jitted step is just the pallas_call
    packed_bf16 = prepack_params(params, weight_dtype=jnp.bfloat16)
    enc_bf16 = prepack_encoder(encoder_outputs, weight_dtype=jnp.bfloat16)
    step_bf16 = make_step_fn(approx_recip=True)
    logits_p, new_hidden = step_bf16(packed_bf16, ids2d, hidden, enc_bf16)
    jax.block_until_ready((logits_p, new_hidden))

    Vp = logits_p.shape[1]
    assert logits_p.shape == (BATCH, Vp)
    assert new_hidden.shape == (LAYERS, BATCH, HIDDEN)
    logits = np.asarray(logits_p)[:, :VOCAB]     # pad columns are -1e30 (argmax-safe)
    np.testing.assert_allclose(logits, np.asarray(ref_logits), rtol=2e-2, atol=2e-2)
    np.testing.assert_allclose(np.asarray(new_hidden), np.asarray(ref_hidden),
                               rtol=2e-2, atol=2e-2)

    print("KERNEL_OK")
</pallas_src>

<mosaic_0001>
module attributes {stable_mosaic.version = 11 : i64} {
  func.func @attn_decoder_kernel(%arg0: memref<8x1xi32, #tpu.memory_space<vmem>>, %arg1: memref<2x8x32xf32, #tpu.memory_space<vmem>>, %arg2: memref<8x32x128xf32, #tpu.memory_space<vmem>>, %arg3: memref<64x32xf32, #tpu.memory_space<vmem>>, %arg4: memref<64x128xf32, #tpu.memory_space<vmem>>, %arg5: memref<64x32xf32, #tpu.memory_space<vmem>>, %arg6: memref<2x32x384xf32, #tpu.memory_space<vmem>>, %arg7: memref<2x32x384xf32, #tpu.memory_space<vmem>>, %arg8: memref<2x2x1x384xf32, #tpu.memory_space<vmem>>, %arg9: memref<32x128xf32, #tpu.memory_space<vmem>>, %arg10: memref<3x128xf32, #tpu.memory_space<vmem>>, %arg11: memref<8x128xf32, #tpu.memory_space<vmem>>, %arg12: memref<2x8x32xf32, #tpu.memory_space<vmem>>) attributes {dimension_semantics = [], scalar_prefetch = 0 : i64, scratch_operands = 0 : i64, tpu.core_type = #tpu.core_type<tc>} {
    %c0 = arith.constant 0 : index
    %c0_0 = arith.constant 0 : index
    %c0_1 = arith.constant 0 : index
    %0 = vector.load %arg1[%c0, %c0_0, %c0_1] : memref<2x8x32xf32, #tpu.memory_space<vmem>>, vector<2x8x32xf32>
    %c0_2 = arith.constant 0 : index
    %c0_3 = arith.constant 0 : index
    %1 = vector.load %arg10[%c0_2, %c0_3] : memref<3x128xf32, #tpu.memory_space<vmem>>, vector<1x128xf32>
    %c1 = arith.constant 1 : index
    %c0_4 = arith.constant 0 : index
    %2 = vector.load %arg10[%c1, %c0_4] : memref<3x128xf32, #tpu.memory_space<vmem>>, vector<1x32xf32>
    %c2 = arith.constant 2 : index
    %c0_5 = arith.constant 0 : index
    %3 = vector.load %arg10[%c2, %c0_5] : memref<3x128xf32, #tpu.memory_space<vmem>>, vector<1x128xf32>
    %c0_6 = arith.constant 0 : index
    %c0_7 = arith.constant 0 : index
    %4 = vector.load %arg0[%c0_6, %c0_7] : memref<8x1xi32, #tpu.memory_space<vmem>>, vector<8x1xi32>
    %5 = tpu.iota {dimensions = array<i32: 1>} : vector<8x64xi32>
    %6 = vector.broadcast %4 : vector<8x1xi32> to vector<8x64xi32>
    %7 = arith.cmpi eq, %5, %6 : vector<8x64xi32>
    %8 = arith.extui %7 : vector<8x64xi1> to vector<8x64xi32>
    %9 = arith.sitofp %8 : vector<8x64xi32> to vector<8x64xf32>
    %c0_8 = arith.constant 0 : index
    %c0_9 = arith.constant 0 : index
    %10 = vector.load %arg3[%c0_8, %c0_9] : memref<64x32xf32, #tpu.memory_space<vmem>>, vector<64x32xf32>
    %cst = arith.constant dense<0.000000e+00> : vector<8x32xf32>
    %11 = tpu.matmul %9, %10, %cst {dimension_numbers = #tpu.dot_dimension_numbers<[1], [0], [0], [1], [0, 0, 1, 1], [], []>} : vector<8x64xf32>, vector<64x32xf32>, vector<8x32xf32> -> vector<8x32xf32>
    %12 = vector.extract_strided_slice %0 {offsets = [1, 0, 0], sizes = [1, 8, 32], strides = [1, 1, 1]} : vector<2x8x32xf32> to vector<1x8x32xf32>
    %13 = vector.shape_cast %12 : vector<1x8x32xf32> to vector<8x32xf32>
    %14 = tpu.concatenate %11, %13 in 1 : vector<8x32xf32>, vector<8x32xf32> -> vector<8x64xf32>
    %c0_10 = arith.constant 0 : index
    %c0_11 = arith.constant 0 : index
    %15 = vector.load %arg4[%c0_10, %c0_11] : memref<64x128xf32, #tpu.memory_space<vmem>>, vector<64x128xf32>
    %cst_12 = arith.constant dense<0.000000e+00> : vector<8x128xf32>
    %16 = tpu.matmul %14, %15, %cst_12 {dimension_numbers = #tpu.dot_dimension_numbers<[1], [0], [0], [1], [0, 0, 1, 1], [], []>} : vector<8x64xf32>, vector<64x128xf32>, vector<8x128xf32> -> vector<8x128xf32>
    %17 = vector.broadcast %1 : vector<1x128xf32> to vector<8x128xf32>
    %18 = arith.addf %16, %17 : vector<8x128xf32>
    %cst_13 = arith.constant dense<0xFF800000> : vector<8xf32>
    %19 = vector.multi_reduction <maximumf>, %18, %cst_13 [1] : vector<8x128xf32> to vector<8xf32>
    %20 = vector.shape_cast %19 : vector<8xf32> to vector<8x1xf32>
    %21 = vector.broadcast %20 : vector<8x1xf32> to vector<8x128xf32>
    %22 = arith.subf %18, %21 : vector<8x128xf32>
    %23 = math.exp %22 : vector<8x128xf32>
    %cst_14 = arith.constant dense<0.000000e+00> : vector<8xf32>
    %24 = vector.multi_reduction <add>, %23, %cst_14 [1] : vector<8x128xf32> to vector<8xf32>
    %25 = vector.shape_cast %24 : vector<8xf32> to vector<8x1xf32>
    %26 = vector.broadcast %25 : vector<8x1xf32> to vector<8x128xf32>
    %27 = arith.divf %23, %26 : vector<8x128xf32>
    %28 = vector.shape_cast %27 : vector<8x128xf32> to vector<8x1x128xf32>
    %c0_15 = arith.constant 0 : index
    %c0_16 = arith.constant 0 : index
    %c0_17 = arith.constant 0 : index
    %29 = vector.load %arg2[%c0_15, %c0_16, %c0_17] : memref<8x32x128xf32, #tpu.memory_space<vmem>>, vector<8x32x128xf32>
    %30 = vector.broadcast %28 : vector<8x1x128xf32> to vector<8x32x128xf32>
    %31 = arith.mulf %30, %29 : vector<8x32x128xf32>
    %cst_18 = arith.constant dense<0.000000e+00> : vector<8x32xf32>
    %32 = vector.multi_reduction <add>, %31, %cst_18 [2] : vector<8x32x128xf32> to vector<8x32xf32>
    %33 = tpu.concatenate %11, %32 in 1 : vector<8x32xf32>, vector<8x32xf32> -> vector<8x64xf32>
    %c0_19 = arith.constant 0 : index
    %c0_20 = arith.constant 0 : index
    %34 = vector.load %arg5[%c0_19, %c0_20] : memref<64x32xf32, #tpu.memory_space<vmem>>, vector<64x32xf32>
    %cst_21 = arith.constant dense<0.000000e+00> : vector<8x32xf32>
    %35 = tpu.matmul %33, %34, %cst_21 {dimension_numbers = #tpu.dot_dimension_numbers<[1], [0], [0], [1], [0, 0, 1, 1], [], []>} : vector<8x64xf32>, vector<64x32xf32>, vector<8x32xf32> -> vector<8x32xf32>
    %36 = vector.broadcast %2 : vector<1x32xf32> to vector<8x32xf32>
    %37 = arith.addf %35, %36 : vector<8x32xf32>
    %cst_22 = arith.constant 0.000000e+00 : f32
    %38 = vector.broadcast %cst_22 : f32 to vector<8x32xf32>
    %39 = arith.maximumf %37, %38 : vector<8x32xf32>
    %c0_23 = arith.constant 0 : index
    %c0_24 = arith.constant 0 : index
    %c0_25 = arith.constant 0 : index
    %40 = vector.load %arg7[%c0_23, %c0_24, %c0_25] : memref<2x32x384xf32, #tpu.memory_space<vmem>>, vector<2x32x384xf32>
    "tpu.trace_start"() <{level = 10 : i32, message = "lbh,lhk->lbk"}> : () -> ()
    %cst_26 = arith.constant dense<0.000000e+00> : vector<2x8x384xf32>
    %41 = tpu.matmul %0, %40, %cst_26 {dimension_numbers = #tpu.dot_dimension_numbers<[2], [1], [1], [2], [0, 0, 0, 1, 1, 2], [0], [0]>} : vector<2x8x32xf32>, vector<2x32x384xf32>, vector<2x8x384xf32> -> vector<2x8x384xf32>
    "tpu.trace_stop"() : () -> ()
    %42 = vector.extract_strided_slice %0 {offsets = [0, 0, 0], sizes = [1, 8, 32], strides = [1, 1, 1]} : vector<2x8x32xf32> to vector<1x8x32xf32>
    %43 = vector.shape_cast %42 : vector<1x8x32xf32> to vector<8x32xf32>
    %c0_27 = arith.constant 0 : index
    %c0_28 = arith.constant 0 : index
    %c0_29 = arith.constant 0 : index
    %44 = vector.load %arg6[%c0_27, %c0_28, %c0_29] : memref<2x32x384xf32, #tpu.memory_space<vmem>>, vector<1x32x384xf32>
    %45 = vector.shape_cast %44 : vector<1x32x384xf32> to vector<32x384xf32>
    %cst_30 = arith.constant dense<0.000000e+00> : vector<8x384xf32>
    %46 = tpu.matmul %39, %45, %cst_30 {dimension_numbers = #tpu.dot_dimension_numbers<[1], [0], [0], [1], [0, 0, 1, 1], [], []>} : vector<8x32xf32>, vector<32x384xf32>, vector<8x384xf32> -> vector<8x384xf32>
    %c0_31 = arith.constant 0 : index
    %c0_32 = arith.constant 0 : index
    %c0_33 = arith.constant 0 : index
    %c0_34 = arith.constant 0 : index
    %47 = vector.load %arg8[%c0_31, %c0_32, %c0_33, %c0_34] : memref<2x2x1x384xf32, #tpu.memory_space<vmem>>, vector<1x1x1x384xf32>
    %48 = vector.shape_cast %47 : vector<1x1x1x384xf32> to vector<1x384xf32>
    %49 = vector.broadcast %48 : vector<1x384xf32> to vector<8x384xf32>
    %50 = arith.addf %46, %49 : vector<8x384xf32>
    %51 = vector.extract_strided_slice %41 {offsets = [0, 0, 0], sizes = [1, 8, 384], strides = [1, 1, 1]} : vector<2x8x384xf32> to vector<1x8x384xf32>
    %52 = vector.shape_cast %51 : vector<1x8x384xf32> to vector<8x384xf32>
    %c0_35 = arith.constant 0 : index
    %c1_36 = arith.constant 1 : index
    %c0_37 = arith.constant 0 : index
    %c0_38 = arith.constant 0 : index
    %53 = vector.load %arg8[%c0_35, %c1_36, %c0_37, %c0_38] : memref<2x2x1x384xf32, #tpu.memory_space<vmem>>, vector<1x1x1x384xf32>
    %54 = vector.shape_cast %53 : vector<1x1x1x384xf32> to vector<1x384xf32>
    %55 = vector.broadcast %54 : vector<1x384xf32> to vector<8x384xf32>
    %56 = arith.addf %52, %55 : vector<8x384xf32>
    %57 = vector.extract_strided_slice %50 {offsets = [0, 0], sizes = [8, 128], strides = [1, 1]} : vector<8x384xf32> to vector<8x128xf32>
    %58 = vector.extract_strided_slice %56 {offsets = [0, 0], sizes = [8, 128], strides = [1, 1]} : vector<8x384xf32> to vector<8x128xf32>
    %59 = arith.addf %57, %58 : vector<8x128xf32>
    %60 = arith.negf %59 : vector<8x128xf32>
    %61 = math.exp %60 : vector<8x128xf32>
    %cst_39 = arith.constant 1.000000e+00 : f32
    %62 = vector.broadcast %cst_39 : f32 to vector<8x128xf32>
    %63 = arith.addf %62, %61 : vector<8x128xf32>
    %64 = arith.divf %62, %63 : vector<8x128xf32>
    %65 = vector.extract_strided_slice %50 {offsets = [0, 128], sizes = [8, 128], strides = [1, 1]} : vector<8x384xf32> to vector<8x128xf32>
    %66 = vector.extract_strided_slice %56 {offsets = [0, 128], sizes = [8, 128], strides = [1, 1]} : vector<8x384xf32> to vector<8x128xf32>
    %67 = arith.addf %65, %66 : vector<8x128xf32>
    %68 = arith.negf %67 : vector<8x128xf32>
    %69 = math.exp %68 : vector<8x128xf32>
    %cst_40 = arith.constant 1.000000e+00 : f32
    %70 = vector.broadcast %cst_40 : f32 to vector<8x128xf32>
    %71 = arith.addf %70, %69 : vector<8x128xf32>
    %72 = arith.divf %70, %71 : vector<8x128xf32>
    %73 = vector.extract_strided_slice %50 {offsets = [0, 256], sizes = [8, 128], strides = [1, 1]} : vector<8x384xf32> to vector<8x128xf32>
    %74 = vector.extract_strided_slice %56 {offsets = [0, 256], sizes = [8, 128], strides = [1, 1]} : vector<8x384xf32> to vector<8x128xf32>
    %75 = arith.mulf %64, %74 : vector<8x128xf32>
    %76 = arith.addf %73, %75 : vector<8x128xf32>
    %77 = math.tanh %76 : vector<8x128xf32>
    %78 = vector.extract_strided_slice %72 {offsets = [0, 0], sizes = [8, 32], strides = [1, 1]} : vector<8x128xf32> to vector<8x32xf32>
    %cst_41 = arith.constant 1.000000e+00 : f32
    %79 = vector.broadcast %cst_41 : f32 to vector<8x32xf32>
    %80 = arith.subf %79, %78 : vector<8x32xf32>
    %81 = vector.extract_strided_slice %77 {offsets = [0, 0], sizes = [8, 32], strides = [1, 1]} : vector<8x128xf32> to vector<8x32xf32>
    %82 = arith.mulf %80, %81 : vector<8x32xf32>
    %83 = vector.extract_strided_slice %72 {offsets = [0, 0], sizes = [8, 32], strides = [1, 1]} : vector<8x128xf32> to vector<8x32xf32>
    %84 = arith.mulf %83, %43 : vector<8x32xf32>
    %85 = arith.addf %82, %84 : vector<8x32xf32>
    %86 = vector.extract_strided_slice %0 {offsets = [1, 0, 0], sizes = [1, 8, 32], strides = [1, 1, 1]} : vector<2x8x32xf32> to vector<1x8x32xf32>
    %87 = vector.shape_cast %86 : vector<1x8x32xf32> to vector<8x32xf32>
    %c1_42 = arith.constant 1 : index
    %c0_43 = arith.constant 0 : index
    %c0_44 = arith.constant 0 : index
    %88 = vector.load %arg6[%c1_42, %c0_43, %c0_44] : memref<2x32x384xf32, #tpu.memory_space<vmem>>, vector<1x32x384xf32>
    %89 = vector.shape_cast %88 : vector<1x32x384xf32> to vector<32x384xf32>
    %cst_45 = arith.constant dense<0.000000e+00> : vector<8x384xf32>
    %90 = tpu.matmul %85, %89, %cst_45 {dimension_numbers = #tpu.dot_dimension_numbers<[1], [0], [0], [1], [0, 0, 1, 1], [], []>} : vector<8x32xf32>, vector<32x384xf32>, vector<8x384xf32> -> vector<8x384xf32>
    %c1_46 = arith.constant 1 : index
    %c0_47 = arith.constant 0 : index
    %c0_48 = arith.constant 0 : index
    %c0_49 = arith.constant 0 : index
    %91 = vector.load %arg8[%c1_46, %c0_47, %c0_48, %c0_49] : memref<2x2x1x384xf32, #tpu.memory_space<vmem>>, vector<1x1x1x384xf32>
    %92 = vector.shape_cast %91 : vector<1x1x1x384xf32> to vector<1x384xf32>
    %93 = vector.broadcast %92 : vector<1x384xf32> to vector<8x384xf32>
    %94 = arith.addf %90, %93 : vector<8x384xf32>
    %95 = vector.extract_strided_slice %41 {offsets = [1, 0, 0], sizes = [1, 8, 384], strides = [1, 1, 1]} : vector<2x8x384xf32> to vector<1x8x384xf32>
    %96 = vector.shape_cast %95 : vector<1x8x384xf32> to vector<8x384xf32>
    %c1_50 = arith.constant 1 : index
    %c1_51 = arith.constant 1 : index
    %c0_52 = arith.constant 0 : index
    %c0_53 = arith.constant 0 : index
    %97 = vector.load %arg8[%c1_50, %c1_51, %c0_52, %c0_53] : memref<2x2x1x384xf32, #tpu.memory_space<vmem>>, vector<1x1x1x384xf32>
    %98 = vector.shape_cast %97 : vector<1x1x1x384xf32> to vector<1x384xf32>
    %99 = vector.broadcast %98 : vector<1x384xf32> to vector<8x384xf32>
    %100 = arith.addf %96, %99 : vector<8x384xf32>
    %101 = vector.extract_strided_slice %94 {offsets = [0, 0], sizes = [8, 128], strides = [1, 1]} : vector<8x384xf32> to vector<8x128xf32>
    %102 = vector.extract_strided_slice %100 {offsets = [0, 0], sizes = [8, 128], strides = [1, 1]} : vector<8x384xf32> to vector<8x128xf32>
    %103 = arith.addf %101, %102 : vector<8x128xf32>
    %104 = arith.negf %103 : vector<8x128xf32>
    %105 = math.exp %104 : vector<8x128xf32>
    %cst_54 = arith.constant 1.000000e+00 : f32
    %106 = vector.broadcast %cst_54 : f32 to vector<8x128xf32>
    %107 = arith.addf %106, %105 : vector<8x128xf32>
    %108 = arith.divf %106, %107 : vector<8x128xf32>
    %109 = vector.extract_strided_slice %94 {offsets = [0, 128], sizes = [8, 128], strides = [1, 1]} : vector<8x384xf32> to vector<8x128xf32>
    %110 = vector.extract_strided_slice %100 {offsets = [0, 128], sizes = [8, 128], strides = [1, 1]} : vector<8x384xf32> to vector<8x128xf32>
    %111 = arith.addf %109, %110 : vector<8x128xf32>
    %112 = arith.negf %111 : vector<8x128xf32>
    %113 = math.exp %112 : vector<8x128xf32>
    %cst_55 = arith.constant 1.000000e+00 : f32
    %114 = vector.broadcast %cst_55 : f32 to vector<8x128xf32>
    %115 = arith.addf %114, %113 : vector<8x128xf32>
    %116 = arith.divf %114, %115 : vector<8x128xf32>
    %117 = vector.extract_strided_slice %94 {offsets = [0, 256], sizes = [8, 128], strides = [1, 1]} : vector<8x384xf32> to vector<8x128xf32>
    %118 = vector.extract_strided_slice %100 {offsets = [0, 256], sizes = [8, 128], strides = [1, 1]} : vector<8x384xf32> to vector<8x128xf32>
    %119 = arith.mulf %108, %118 : vector<8x128xf32>
    %120 = arith.addf %117, %119 : vector<8x128xf32>
    %121 = math.tanh %120 : vector<8x128xf32>
    %122 = vector.extract_strided_slice %116 {offsets = [0, 0], sizes = [8, 32], strides = [1, 1]} : vector<8x128xf32> to vector<8x32xf32>
    %cst_56 = arith.constant 1.000000e+00 : f32
    %123 = vector.broadcast %cst_56 : f32 to vector<8x32xf32>
    %124 = arith.subf %123, %122 : vector<8x32xf32>
    %125 = vector.extract_strided_slice %121 {offsets = [0, 0], sizes = [8, 32], strides = [1, 1]} : vector<8x128xf32> to vector<8x32xf32>
    %126 = arith.mulf %124, %125 : vector<8x32xf32>
    %127 = vector.extract_strided_slice %116 {offsets = [0, 0], sizes = [8, 32], strides = [1, 1]} : vector<8x128xf32> to vector<8x32xf32>
    %128 = arith.mulf %127, %87 : vector<8x32xf32>
    %129 = arith.addf %126, %128 : vector<8x32xf32>
    %130 = vector.shape_cast %85 : vector<8x32xf32> to vector<1x8x32xf32>
    %131 = vector.shape_cast %129 : vector<8x32xf32> to vector<1x8x32xf32>
    %132 = tpu.concatenate %130, %131 in 0 : vector<1x8x32xf32>, vector<1x8x32xf32> -> vector<2x8x32xf32>
    %c0_57 = arith.constant 0 : index
    %c0_58 = arith.constant 0 : index
    %c0_59 = arith.constant 0 : index
    %133 = vector.load %arg12[%c0_57, %c0_58, %c0_59] : memref<2x8x32xf32, #tpu.memory_space<vmem>>, vector<2x8x32xf32>
    tpu.vector_store %arg12[%c0_57, %c0_58, %c0_59], %132 {strides = array<i32>} : memref<2x8x32xf32, #tpu.memory_space<vmem>>, vector<2x8x32xf32>,
    %c0_60 = arith.constant 0 : index
    %c0_61 = arith.constant 0 : index
    %134 = vector.load %arg9[%c0_60, %c0_61] : memref<32x128xf32, #tpu.memory_space<vmem>>, vector<32x128xf32>
    %cst_62 = arith.constant dense<0.000000e+00> : vector<8x128xf32>
    %135 = tpu.matmul %129, %134, %cst_62 {dimension_numbers = #tpu.dot_dimension_numbers<[1], [0], [0], [1], [0, 0, 1, 1], [], []>} : vector<8x32xf32>, vector<32x128xf32>, vector<8x128xf32> -> vector<8x128xf32>
    %136 = vector.broadcast %3 : vector<1x128xf32> to vector<8x128xf32>
    %137 = arith.addf %135, %136 : vector<8x128xf32>
    %c0_63 = arith.constant 0 : index
    %c0_64 = arith.constant 0 : index
    %138 = vector.load %arg11[%c0_63, %c0_64] : memref<8x128xf32, #tpu.memory_space<vmem>>, vector<8x128xf32>
    tpu.vector_store %arg11[%c0_63, %c0_64], %137 {strides = array<i32>} : memref<8x128xf32, #tpu.memory_space<vmem>>, vector<8x128xf32>,
    return
  }
}

</mosaic_0001>

<llo_original>
// kernel: step.1
$region0: #{step.1}
  #allocation0 [shape = 'u32[]', space=smem, size = 0x4, offset = 0x4, fixed_abs, tag = 'smem constant byte address 0x4 - core index']
  #allocation1 [shape = 'u32[144,128]{1,0:T(1,128)}', space=vmem, size = 0x12000, scoped, tag = 'internal scratch']
  %s0 = inlined_call_operand.vmem [shape: s32[8,1], index: 0, kind: input, shape index: {}]
  %s1 = inlined_call_operand.vmem [shape: f32[2,8,32], index: 1, kind: input, shape index: {}]
  %s2 = inlined_call_operand.hbm [shape: f32[8,32,128], index: 2, kind: input, shape index: {}]
  %s3 = inlined_call_operand.vmem [shape: f32[64,32], index: 3, kind: input, shape index: {}]
  %s4 = inlined_call_operand.hbm [shape: f32[64,128], index: 4, kind: input, shape index: {}]
  %s5 = inlined_call_operand.vmem [shape: f32[64,32], index: 5, kind: input, shape index: {}]
  %s6 = inlined_call_operand.vmem [shape: f32[2,32,384], index: 6, kind: input, shape index: {}]
  %s7 = inlined_call_operand.hbm [shape: f32[2,32,384], index: 7, kind: input, shape index: {}]
  %s8 = inlined_call_operand.hbm [shape: f32[2,2,1,384], index: 8, kind: input, shape index: {}]
  %s9 = inlined_call_operand.hbm [shape: f32[32,128], index: 9, kind: input, shape index: {}]
  %s10 = inlined_call_operand.vmem [shape: f32[3,128], index: 10, kind: input, shape index: {}]
  %s11 = inlined_call_operand.hbm [shape: f32[8,128], index: 11, kind: output, shape index: {0}]
  %s12 = inlined_call_operand.hbm [shape: f32[2,8,32], index: 12, kind: output, shape index: {1}]
  %13 = xla_tuple %s11, %s12
  %s14 = sld [smem:[#allocation0]]
  $region82: #{step.1} parent=0
    _
  %s16 = ssub.s32 1, %s14
  %s17 = scalar_select 0, %s16, %s14
  $region1: #{step.1} parent=0
    #allocation2 [shape = 'u8[131072]{0}', space=vmem, size = 0x20000, scoped, tag = 'input window, operand 2, single buffered']
    #allocation3 [shape = 's32[1]{0}', space=sflag, size = 0x4, scoped, tag = 'scoped memory for step.1']
    #allocation4 [shape = 's32[1]{0}', space=sflag, size = 0x4, scoped, tag = 'scoped memory for step.1']
    #allocation5 [shape = 'u8[32768]{0}', space=vmem, size = 0x8000, scoped, tag = 'input window, operand 4, single buffered']
    #allocation6 [shape = 's32[1]{0}', space=sflag, size = 0x4, scoped, tag = 'scoped memory for step.1']
    #allocation7 [shape = 'u8[98304]{0}', space=vmem, size = 0x18000, scoped, tag = 'input window, operand 7, single buffered']
    #allocation8 [shape = 'u8[6144]{0}', space=vmem, size = 0x1800, scoped, tag = 'input window, operand 8, single buffered']
    #allocation9 [shape = 's32[1]{0}', space=sflag, size = 0x4, scoped, tag = 'scoped memory for step.1']
    #allocation10 [shape = 'u8[16384]{0}', space=vmem, size = 0x4000, scoped, tag = 'input window, operand 9, single buffered']
    #allocation11 [shape = 'u8[4096]{0}', space=vmem, size = 0x1000, scoped, tag = 'output window, operand 0, single buffered']
    #allocation12 [shape = 'u8[8192]{0}', space=vmem, size = 0x2000, scoped, tag = 'output window, operand 1, single buffered']
    #allocation13 [shape = 's32[1]{0}', space=sflag, size = 0x4, scoped, tag = 'scoped memory for step.1']
    %18 = vsyncpa [#allocation3], 0
    %19 = vsyncpa [#allocation6], 0
    %20 = vsyncpa [#allocation9], 0
    %21 = vsyncpa [#allocation4], 0
    %22 = vsyncpa [#allocation13], 0
    // Predicated region
    $region2: #{step.1} parent=1 // pred_check
      _
    $region3: #{step.1} parent=1 // pred_check_branch
      %24 = sbr.rel (0) target = $region5
    $region4: #{step.1} parent=1 // pred_region
      _
    $region5: #{step.1} parent=1 // pred_fallthru
      _
    // Predicated region
    $region6: #{step.1} parent=1 // pred_check
      _
    $region7: #{step.1} parent=1 // pred_check_branch
      %26 = sbr.rel (0) target = $region9
    $region8: #{step.1} parent=1 // pred_region
      _
    $region9: #{step.1} parent=1 // pred_fallthru
      _
    // Predicated region
    $region10: #{step.1} parent=1 // pred_check
      _
    $region11: #{step.1} parent=1 // pred_check_branch
      %28 = sbr.rel (0) target = $region13
    $region12: #{step.1} parent=1 // pred_region
      %s30 = ssub.s32 4096, 4096
      %31 = vsyncadd [#allocation3], %s30
      %s32 = sshll.u32 [#allocation2], 4
      %s33 = int_to_ptr.vmem [resolvable:$true] %s32
      %38 = dma.hbm_to_vmem [thread:$0]  %s2, 4096, %s33, [#allocation3], 128, 128, 8
    $region13: #{step.1} parent=1 // pred_fallthru
      _
    // Predicated region
    $region14: #{step.1} parent=1 // pred_check
      _
    $region15: #{step.1} parent=1 // pred_check_branch
      %40 = sbr.rel (0) target = $region17
    $region16: #{step.1} parent=1 // pred_region
      _
    $region17: #{step.1} parent=1 // pred_fallthru
      _
    // Predicated region
    $region18: #{step.1} parent=1 // pred_check
      _
    $region19: #{step.1} parent=1 // pred_check_branch
      %42 = sbr.rel (0) target = $region21
    $region20: #{step.1} parent=1 // pred_region
      %s44 = ssub.s32 1024, 1024
      %45 = vsyncadd [#allocation6], %s44
      %s46 = sshll.u32 [#allocation5], 4
      %s47 = int_to_ptr.vmem [resolvable:$true] %s46
      %52 = dma.hbm_to_vmem [thread:$0]  %s4, 1024, %s47, [#allocation6], 128, 128, 8
    $region21: #{step.1} parent=1 // pred_fallthru
      _
    // Predicated region
    $region22: #{step.1} parent=1 // pred_check
      _
    $region23: #{step.1} parent=1 // pred_check_branch
      %54 = sbr.rel (0) target = $region25
    $region24: #{step.1} parent=1 // pred_region
      _
    $region25: #{step.1} parent=1 // pred_fallthru
      _
    // Predicated region
    $region26: #{step.1} parent=1 // pred_check
      _
    $region27: #{step.1} parent=1 // pred_check_branch
      %56 = sbr.rel (0) target = $region29
    $region28: #{step.1} parent=1 // pred_region
      _
    $region29: #{step.1} parent=1 // pred_fallthru
      _
    // Predicated region
    $region30: #{step.1} parent=1 // pred_check
      _
    $region31: #{step.1} parent=1 // pred_check_branch
      %58 = sbr.rel (0) target = $region33
    $region32: #{step.1} parent=1 // pred_region
      %s60 = ssub.s32 3072, 3072
      %61 = vsyncadd [#allocation6], %s60
      %s62 = sshll.u32 [#allocation7], 4
      %s63 = int_to_ptr.vmem [resolvable:$true] %s62
      %68 = dma.hbm_to_vmem [thread:$0]  %s7, 3072, %s63, [#allocation6], 384, 384, 24
    $region33: #{step.1} parent=1 // pred_fallthru
      _
    // Predicated region
    $region34: #{step.1} parent=1 // pred_check
      _
    $region35: #{step.1} parent=1 // pred_check_branch
      %70 = sbr.rel (0) target = $region37
    $region36: #{step.1} parent=1 // pred_region
      %s72 = ssub.s32 192, 192
      %73 = vsyncadd [#allocation9], %s72
      %s74 = sshll.u32 [#allocation8], 4
      %s75 = int_to_ptr.vmem [resolvable:$true] %s74
      %80 = dma.hbm_to_vmem [thread:$0]  %s8, 192, %s75, [#allocation9], 48, 48, 3
    $region37: #{step.1} parent=1 // pred_fallthru
      _
    // Predicated region
    $region38: #{step.1} parent=1 // pred_check
      _
    $region39: #{step.1} parent=1 // pred_check_branch
      %82 = sbr.rel (0) target = $region41
    $region40: #{step.1} parent=1 // pred_region
      %s84 = ssub.s32 512, 512
      %85 = vsyncadd [#allocation9], %s84
      %s86 = sshll.u32 [#allocation10], 4
      %s87 = int_to_ptr.vmem [resolvable:$true] %s86
      %92 = dma.hbm_to_vmem [thread:$0]  %s9, 512, %s87, [#allocation9], 128, 128, 8
    $region41: #{step.1} parent=1 // pred_fallthru
      _
    // Predicated region
    $region42: #{step.1} parent=1 // pred_check
      _
    $region43: #{step.1} parent=1 // pred_check_branch
      %94 = sbr.rel (0) target = $region45
    $region44: #{step.1} parent=1 // pred_region
      _
    $region45: #{step.1} parent=1 // pred_fallthru
      _
    // Predicated region
    $region46: #{step.1} parent=1 // pred_check
      _
    $region47: #{step.1} parent=1 // pred_check_branch
      %96 = sbr.rel (0) target = $region49
    $region48: #{step.1} parent=1 // pred_region
      %97 = dma.done [#allocation3], 4096
    $region49: #{step.1} parent=1 // pred_fallthru
      _
    // Predicated region
    $region50: #{step.1} parent=1 // pred_check
      _
    $region51: #{step.1} parent=1 // pred_check_branch
      %99 = sbr.rel (0) target = $region53
    $region52: #{step.1} parent=1 // pred_region
      %100 = dma.done [#allocation6], 1024
    $region53: #{step.1} parent=1 // pred_fallthru
      _
    // Predicated region
    $region54: #{step.1} parent=1 // pred_check
      _
    $region55: #{step.1} parent=1 // pred_check_branch
      %102 = sbr.rel (0) target = $region57
    $region56: #{step.1} parent=1 // pred_region
      %103 = dma.done [#allocation6], 3072
    $region57: #{step.1} parent=1 // pred_fallthru
      _
    // Predicated region
    $region58: #{step.1} parent=1 // pred_check
      _
    $region59: #{step.1} parent=1 // pred_check_branch
      %105 = sbr.rel (0) target = $region61
    $region60: #{step.1} parent=1 // pred_region
      %106 = dma.done [#allocation9], 192
    $region61: #{step.1} parent=1 // pred_fallthru
      _
    // Predicated region
    $region62: #{step.1} parent=1 // pred_check
      _
    $region63: #{step.1} parent=1 // pred_check_branch
      %108 = sbr.rel (0) target = $region65
    $region64: #{step.1} parent=1 // pred_region
      %109 = dma.done [#allocation9], 512
    $region65: #{step.1} parent=1 // pred_fallthru
      _
    %v110 = vld [vmem:[%s1] sm:$0xff]
    %v111 = vld [vmem:[%s1 + $0x8] sm:$0xff]
    %v112 = vld [vmem:[%s10] sm:$0x1]
    %v113 = vld [vmem:[%s10 + $0x1] sm:$0x1]
    %v114 = vld [vmem:[%s10 + $0x2] sm:$0x1]
    %v115 = vld [vmem:[%s0] sm:$0xff]
    %v116 = vlaneseq
    %v117 = vand.u32 %v116, 127
    %118 = vset.pattern.permute.xlu0 0
    %119 = vperm.xlu0 %118, %v115
    %v120 = vpop.permute.xlu0 %119
    %vm121 = vcmp.eq.s32.totalorder %v117, %v120
    %v122 = vsel %vm121, 1, 0
    %v123 = vcvt.s32.f32 %v122
    %v124 = vld [vmem:[%s3] sm:$0xff]
    %v125 = vld [vmem:[%s3 + $0x8] sm:$0xff]
    %v126 = vld [vmem:[%s3 + $0x10] sm:$0xff]
    %v127 = vld [vmem:[%s3 + $0x18] sm:$0xff]
    %v128 = vld [vmem:[%s3 + $0x20] sm:$0xff]
    %v129 = vld [vmem:[%s3 + $0x28] sm:$0xff]
    %v130 = vld [vmem:[%s3 + $0x30] sm:$0xff]
    %v131 = vld [vmem:[%s3 + $0x38] sm:$0xff]
    %vm132 = vcmask 523264
    %v134 = vsel %vm132, %v123, 0
    %136 = vmatprep.subr.mxu0 0.0
    %137 = vmatpush1.msra.mxu0 0.0
    %138 = vmatprep.subr.mxu0 0.0
    %139 = vmatpush1.msra.mxu0 0.0
    %140 = vmatprep.subr.mxu0 0.0
    %141 = vmatpush1.msra.mxu0 0.0
    %142 = vmatprep.subr.mxu0 0.0
    %143 = vmatpush1.msra.mxu0 0.0
    %144 = vmatprep.subr.mxu0 0.0
    %145 = vmatpush1.msra.mxu0 0.0
    %146 = vmatprep.subr.mxu0 0.0
    %147 = vmatpush1.msra.mxu0 0.0
    %148 = vmatprep.subr.mxu0 0.0
    %149 = vmatpush1.msra.mxu0 0.0
    %150 = vmatprep.subr.mxu0 0.0
    %151 = vmatpush1.msra.mxu0 0.0
    %152 = vmatprep.subr.mxu0 0.0
    %153 = vmatpush1.msra.mxu0 %v131
    %154 = vmatprep.subr.mxu0 0.0
    %155 = vmatpush1.msra.mxu0 %v130
    %156 = vmatprep.subr.mxu0 0.0
    %157 = vmatpush1.msra.mxu0 %v129
    %158 = vmatprep.subr.mxu0 0.0
    %159 = vmatpush1.msra.mxu0 %v128
    %160 = vmatprep.subr.mxu0 0.0
    %161 = vmatpush1.msra.mxu0 %v127
    %162 = vmatprep.subr.mxu0 0.0
    %163 = vmatpush1.msra.mxu0 %v126
    %164 = vmatprep.subr.mxu0 0.0
    %165 = vmatpush1.msra.mxu0 %v125
    %166 = vmatprep.subr.mxu0 0.0
    %167 = vmatpush1.msra.mxu0 %v124
    %168 = vmatprep.subr.mxu0 0.0
    %169 = vmatpush2.msra.mxu0 0.0
    %170 = vmatprep.subr.mxu0 0.0
    %171 = vmatpush2.msra.mxu0 0.0
    %172 = vmatprep.subr.mxu0 0.0
    %173 = vmatpush2.msra.mxu0 0.0
    %174 = vmatprep.subr.mxu0 0.0
    %175 = vmatpush2.msra.mxu0 0.0
    %176 = vmatprep.subr.mxu0 0.0
    %177 = vmatpush2.msra.mxu0 0.0
    %178 = vmatprep.subr.mxu0 0.0
    %179 = vmatpush2.msra.mxu0 0.0
    %180 = vmatprep.subr.mxu0 0.0
    %181 = vmatpush2.msra.mxu0 0.0
    %182 = vmatprep.subr.mxu0 0.0
    %183 = vmatpush2.msra.mxu0 0.0
    %184 = vmatprep.subr.mxu0 0.0
    %185 = vmatpush2.msra.mxu0 0.0
    %186 = vmatprep.subr.mxu0 0.0
    %187 = vmatpush2.msra.mxu0 0.0
    %188 = vmatprep.subr.mxu0 0.0
    %189 = vmatpush2.msra.mxu0 0.0
    %190 = vmatprep.subr.mxu0 0.0
    %191 = vmatpush2.msra.mxu0 0.0
    %192 = vmatprep.subr.mxu0 0.0
    %193 = vmatpush2.msra.mxu0 0.0
    %194 = vmatprep.subr.mxu0 0.0
    %195 = vmatpush2.msra.mxu0 0.0
    %196 = vmatprep.subr.mxu0 0.0
    %197 = vmatpush2.msra.mxu0 0.0
    %198 = vmatprep.subr.mxu0 0.0
    %199 = vmatpush2.msra.mxu0 0.0
    %200 = vmatprep.mubr.f32.mxu0 0.0
    %201 = vmatmul.mubr.f32.gmra.mxu0 %v134
    %v202 = vpop.f32.mrf.mxu0
    %v203 = vadd.f32 0.0, %v202
    %v204 = vpop.f32.mrf.mxu0
    %205 = vdwg.mxu0
    %207 = vrot.lane.b32.xlu0 %v111, 32
    %v208 = vpop.permute.xlu0 %207
    %vm210 = vcmask 261120
    %v211 = vsel %vm210, %v203, %v208
    %v212 = vld [vmem:[#allocation5] sm:$0xff]
    %v213 = vld [vmem:[#allocation5 + $0x8] sm:$0xff]
    %v214 = vld [vmem:[#allocation5 + $0x10] sm:$0xff]
    %v215 = vld [vmem:[#allocation5 + $0x18] sm:$0xff]
    %v216 = vld [vmem:[#allocation5 + $0x20] sm:$0xff]
    %v217 = vld [vmem:[#allocation5 + $0x28] sm:$0xff]
    %v218 = vld [vmem:[#allocation5 + $0x30] sm:$0xff]
    %v219 = vld [vmem:[#allocation5 + $0x38] sm:$0xff]
    %v220 = vlaneseq
    %v221 = vshrl.u32 %v220, 7
    %v222 = vsub.s32 0, %v221
    %v223 = vrot.slane %v112, %v222
    %v225 = vsel %vm132, %v211, 0
    %227 = vmatprep.subr.mxu0 0.0
    %228 = vmatpush1.msra.mxu0 0.0
    %229 = vmatprep.subr.mxu0 0.0
    %230 = vmatpush1.msra.mxu0 0.0
    %231 = vmatprep.subr.mxu0 0.0
    %232 = vmatpush1.msra.mxu0 0.0
    %233 = vmatprep.subr.mxu0 0.0
    %234 = vmatpush1.msra.mxu0 0.0
    %235 = vmatprep.subr.mxu0 0.0
    %236 = vmatpush1.msra.mxu0 0.0
    %237 = vmatprep.subr.mxu0 0.0
    %238 = vmatpush1.msra.mxu0 0.0
    %239 = vmatprep.subr.mxu0 0.0
    %240 = vmatpush1.msra.mxu0 0.0
    %241 = vmatprep.subr.mxu0 0.0
    %242 = vmatpush1.msra.mxu0 0.0
    %243 = vmatprep.subr.mxu0 0.0
    %244 = vmatpush1.msra.mxu0 %v219
    %245 = vmatprep.subr.mxu0 0.0
    %246 = vmatpush1.msra.mxu0 %v218
    %247 = vmatprep.subr.mxu0 0.0
    %248 = vmatpush1.msra.mxu0 %v217
    %249 = vmatprep.subr.mxu0 0.0
    %250 = vmatpush1.msra.mxu0 %v216
    %251 = vmatprep.subr.mxu0 0.0
    %252 = vmatpush1.msra.mxu0 %v215
    %253 = vmatprep.subr.mxu0 0.0
    %254 = vmatpush1.msra.mxu0 %v214
    %255 = vmatprep.subr.mxu0 0.0
    %256 = vmatpush1.msra.mxu0 %v213
    %257 = vmatprep.subr.mxu0 0.0
    %258 = vmatpush1.msra.mxu0 %v212
    %259 = vmatprep.subr.mxu0 0.0
    %260 = vmatpush2.msra.mxu0 0.0
    %261 = vmatprep.subr.mxu0 0.0
    %262 = vmatpush2.msra.mxu0 0.0
    %263 = vmatprep.subr.mxu0 0.0
    %264 = vmatpush2.msra.mxu0 0.0
    %265 = vmatprep.subr.mxu0 0.0
    %266 = vmatpush2.msra.mxu0 0.0
    %267 = vmatprep.subr.mxu0 0.0
    %268 = vmatpush2.msra.mxu0 0.0
    %269 = vmatprep.subr.mxu0 0.0
    %270 = vmatpush2.msra.mxu0 0.0
    %271 = vmatprep.subr.mxu0 0.0
    %272 = vmatpush2.msra.mxu0 0.0
    %273 = vmatprep.subr.mxu0 0.0
    %274 = vmatpush2.msra.mxu0 0.0
    %275 = vmatprep.subr.mxu0 0.0
    %276 = vmatpush2.msra.mxu0 0.0
    %277 = vmatprep.subr.mxu0 0.0
    %278 = vmatpush2.msra.mxu0 0.0
    %279 = vmatprep.subr.mxu0 0.0
    %280 = vmatpush2.msra.mxu0 0.0
    %281 = vmatprep.subr.mxu0 0.0
    %282 = vmatpush2.msra.mxu0 0.0
    %283 = vmatprep.subr.mxu0 0.0
    %284 = vmatpush2.msra.mxu0 0.0
    %285 = vmatprep.subr.mxu0 0.0
    %286 = vmatpush2.msra.mxu0 0.0
    %287 = vmatprep.subr.mxu0 0.0
    %288 = vmatpush2.msra.mxu0 0.0
    %289 = vmatprep.subr.mxu0 0.0
    %290 = vmatpush2.msra.mxu0 0.0
    %291 = vmatprep.mubr.f32.mxu0 0.0
    %292 = vmatmul.mubr.f32.gmra.mxu0 %v225
    %v293 = vpop.f32.mrf.mxu0
    %v294 = vadd.f32 %v223, %v293
    %v295 = vpop.f32.mrf.mxu0
    %296 = vdwg.mxu0
    %297 = vmax.xlane.f32.xlu0 %v294
    %v298 = vpop.xlane.xlu0 %297
    %v299 = vsub.f32 %v294, %v298
    %v300 = vmul.f32 %v299, 1.442695
    %v301 = vpow.pop %v300
    %302 = vadd.xlane.f32.xlu0 %v301
    %v303 = vpop.xlane.xlu0 %302
    %v304 = vrcp.pop %v303
    %v305 = vmul.f32 %v301, %v304
    %v307 = vcombine.high %v305, %v305
    %v309 = vunpack.c.l.s4 1966171168
    %v310 = vunpack.c.0.s8 %v309
    %v311 = vlaneseq
    %v312 = vshrl.u32 %v311, 7
    %v313 = vsub.s32 %v310, %v312
    %v314 = vrot.slane %v305, %v313
    %v316 = vunpack.c.l.s4 1966171168
    %v317 = vunpack.c.0.s8 %v316
    %v318 = vlaneseq
    %v319 = vshrl.u32 %v318, 7
    %v320 = vsub.s32 %v317, %v319
    %v321 = vrot.slane %v307, %v320
    %v322 = vcombine.high %v314, %v314
    %v323 = vcombine.high %v321, %v321
    %v325 = vunpack.c.l.s4 1966171168
    %v326 = vunpack.c.0.s8 %v325
    %v327 = vlaneseq
    %v328 = vshrl.u32 %v327, 7
    %v329 = vsub.s32 %v326, %v328
    %v330 = vrot.slane %v314, %v329
    %v332 = vunpack.c.l.s4 1966171168
    %v333 = vunpack.c.0.s8 %v332
    %v334 = vlaneseq
    %v335 = vshrl.u32 %v334, 7
    %v336 = vsub.s32 %v333, %v335
    %v337 = vrot.slane %v321, %v336
    %v339 = vunpack.c.l.s4 1966171168
    %v340 = vunpack.c.0.s8 %v339
    %v341 = vlaneseq
    %v342 = vshrl.u32 %v341, 7
    %v343 = vsub.s32 %v340, %v342
    %v344 = vrot.slane %v322, %v343
    %v346 = vunpack.c.l.s4 1966171168
    %v347 = vunpack.c.0.s8 %v346
    %v348 = vlaneseq
    %v349 = vshrl.u32 %v348, 7
    %v350 = vsub.s32 %v347, %v349
    %v351 = vrot.slane %v323, %v350
    %v352 = vcombine.high %v330, %v330
    %v353 = vcombine.high %v337, %v337
    %v354 = vcombine.high %v344, %v344
    %v355 = vcombine.high %v351, %v351
    %v356 = vld [vmem:[#allocation2] sm:$0xff]
    %v357 = vld [vmem:[#allocation2 + $0x8] sm:$0xff]
    %v358 = vld [vmem:[#allocation2 + $0x10] sm:$0xff]
    %v359 = vld [vmem:[#allocation2 + $0x18] sm:$0xff]
    %v360 = vld [vmem:[#allocation2 + $0x20] sm:$0xff]
    %v361 = vld [vmem:[#allocation2 + $0x28] sm:$0xff]
    %v362 = vld [vmem:[#allocation2 + $0x30] sm:$0xff]
    %v363 = vld [vmem:[#allocation2 + $0x38] sm:$0xff]
    %v364 = vld [vmem:[#allocation2 + $0x40] sm:$0xff]
    %v365 = vld [vmem:[#allocation2 + $0x48] sm:$0xff]
    %v366 = vld [vmem:[#allocation2 + $0x50] sm:$0xff]
    %v367 = vld [vmem:[#allocation2 + $0x58] sm:$0xff]
    %v368 = vld [vmem:[#allocation2 + $0x60] sm:$0xff]
    %v369 = vld [vmem:[#allocation2 + $0x68] sm:$0xff]
    %v370 = vld [vmem:[#allocation2 + $0x70] sm:$0xff]
    %v371 = vld [vmem:[#allocation2 + $0x78] sm:$0xff]
    %v372 = vld [vmem:[#allocation2 + $0x80] sm:$0xff]
    %v373 = vld [vmem:[#allocation2 + $0x88] sm:$0xff]
    %v374 = vld [vmem:[#allocation2 + $0x90] sm:$0xff]
    %v375 = vld [vmem:[#allocation2 + $0x98] sm:$0xff]
    %v376 = vld [vmem:[#allocation2 + $0xa0] sm:$0xff]
    %v377 = vld [vmem:[#allocation2 + $0xa8] sm:$0xff]
    %v378 = vld [vmem:[#allocation2 + $0xb0] sm:$0xff]
    %v379 = vld [vmem:[#allocation2 + $0xb8] sm:$0xff]
    %v380 = vld [vmem:[#allocation2 + $0xc0] sm:$0xff]
    %v381 = vld [vmem:[#allocation2 + $0xc8] sm:$0xff]
    %v382 = vld [vmem:[#allocation2 + $0xd0] sm:$0xff]
    %v383 = vld [vmem:[#allocation2 + $0xd8] sm:$0xff]
    %v384 = vld [vmem:[#allocation2 + $0xe0] sm:$0xff]
    %v385 = vld [vmem:[#allocation2 + $0xe8] sm:$0xff]
    %v386 = vld [vmem:[#allocation2 + $0xf0] sm:$0xff]
    %v387 = vld [vmem:[#allocation2 + $0xf8] sm:$0xff]
    %v388 = vlaneseq
    %v389 = vshrl.u32 %v388, 7
    %v390 = vsub.s32 0, %v389
    %v391 = vrot.slane %v330, %v390
    %v392 = vlaneseq
    %v393 = vshrl.u32 %v392, 7
    %v394 = vsub.s32 0, %v393
    %v395 = vrot.slane %v344, %v394
    %v396 = vlaneseq
    %v397 = vshrl.u32 %v396, 7
    %v398 = vsub.s32 0, %v397
    %v399 = vrot.slane %v352, %v398
    %v400 = vlaneseq
    %v401 = vshrl.u32 %v400, 7
    %v402 = vsub.s32 0, %v401
    %v403 = vrot.slane %v354, %v402
    %v404 = vlaneseq
    %v405 = vshrl.u32 %v404, 7
    %v406 = vsub.s32 0, %v405
    %v407 = vrot.slane %v337, %v406
    %v408 = vlaneseq
    %v409 = vshrl.u32 %v408, 7
    %v410 = vsub.s32 0, %v409
    %v411 = vrot.slane %v351, %v410
    %v412 = vlaneseq
    %v413 = vshrl.u32 %v412, 7
    %v414 = vsub.s32 0, %v413
    %v415 = vrot.slane %v353, %v414
    %v416 = vlaneseq
    %v417 = vshrl.u32 %v416, 7
    %v418 = vsub.s32 0, %v417
    %v419 = vrot.slane %v355, %v418
    %v428 = vmul.f32 %v391, %v356
    %v429 = vmul.f32 %v391, %v357
    %v430 = vmul.f32 %v391, %v358
    %v431 = vmul.f32 %v391, %v359
    %v432 = vmul.f32 %v395, %v360
    %v433 = vmul.f32 %v395, %v361
    %v434 = vmul.f32 %v395, %v362
    %v435 = vmul.f32 %v395, %v363
    %v436 = vmul.f32 %v399, %v364
    %v437 = vmul.f32 %v399, %v365
    %v438 = vmul.f32 %v399, %v366
    %v439 = vmul.f32 %v399, %v367
    %v440 = vmul.f32 %v403, %v368
    %v441 = vmul.f32 %v403, %v369
    %v442 = vmul.f32 %v403, %v370
    %v443 = vmul.f32 %v403, %v371
    %v444 = vmul.f32 %v407, %v372
    %v445 = vmul.f32 %v407, %v373
    %v446 = vmul.f32 %v407, %v374
    %v447 = vmul.f32 %v407, %v375
    %v448 = vmul.f32 %v411, %v376
    %v449 = vmul.f32 %v411, %v377
    %v450 = vmul.f32 %v411, %v378
    %v451 = vmul.f32 %v411, %v379
    %v452 = vmul.f32 %v415, %v380
    %v453 = vmul.f32 %v415, %v381
    %v454 = vmul.f32 %v415, %v382
    %v455 = vmul.f32 %v415, %v383
    %v456 = vmul.f32 %v419, %v384
    %v457 = vmul.f32 %v419, %v385
    %v458 = vmul.f32 %v419, %v386
    %v459 = vmul.f32 %v419, %v387
    %460 = vadd.xlane.f32.xlu0 %v428
    %v461 = vpop.xlane.xlu0 %460
    %462 = vadd.xlane.f32.xlu0 %v429
    %v463 = vpop.xlane.xlu0 %462
    %464 = vadd.xlane.f32.xlu0 %v430
    %v465 = vpop.xlane.xlu0 %464
    %466 = vadd.xlane.f32.xlu0 %v431
    %v467 = vpop.xlane.xlu0 %466
    %468 = vadd.xlane.f32.xlu0 %v432
    %v469 = vpop.xlane.xlu0 %468
    %470 = vadd.xlane.f32.xlu0 %v433
    %v471 = vpop.xlane.xlu0 %470
    %472 = vadd.xlane.f32.xlu0 %v434
    %v473 = vpop.xlane.xlu0 %472
    %474 = vadd.xlane.f32.xlu0 %v435
    %v475 = vpop.xlane.xlu0 %474
    %476 = vadd.xlane.f32.xlu0 %v436
    %v477 = vpop.xlane.xlu0 %476
    %478 = vadd.xlane.f32.xlu0 %v437
    %v479 = vpop.xlane.xlu0 %478
    %480 = vadd.xlane.f32.xlu0 %v438
    %v481 = vpop.xlane.xlu0 %480
    %482 = vadd.xlane.f32.xlu0 %v439
    %v483 = vpop.xlane.xlu0 %482
    %484 = vadd.xlane.f32.xlu0 %v440
    %v485 = vpop.xlane.xlu0 %484
    %486 = vadd.xlane.f32.xlu0 %v441
    %v487 = vpop.xlane.xlu0 %486
    %488 = vadd.xlane.f32.xlu0 %v442
    %v489 = vpop.xlane.xlu0 %488
    %490 = vadd.xlane.f32.xlu0 %v443
    %v491 = vpop.xlane.xlu0 %490
    %492 = vadd.xlane.f32.xlu0 %v444
    %v493 = vpop.xlane.xlu0 %492
    %494 = vadd.xlane.f32.xlu0 %v445
    %v495 = vpop.xlane.xlu0 %494
    %496 = vadd.xlane.f32.xlu0 %v446
    %v497 = vpop.xlane.xlu0 %496
    %498 = vadd.xlane.f32.xlu0 %v447
    %v499 = vpop.xlane.xlu0 %498
    %500 = vadd.xlane.f32.xlu0 %v448
    %v501 = vpop.xlane.xlu0 %500
    %502 = vadd.xlane.f32.xlu0 %v449
    %v503 = vpop.xlane.xlu0 %502
    %504 = vadd.xlane.f32.xlu0 %v450
    %v505 = vpop.xlane.xlu0 %504
    %506 = vadd.xlane.f32.xlu0 %v451
    %v507 = vpop.xlane.xlu0 %506
    %508 = vadd.xlane.f32.xlu0 %v452
    %v509 = vpop.xlane.xlu0 %508
    %510 = vadd.xlane.f32.xlu0 %v453
    %v511 = vpop.xlane.xlu0 %510
    %512 = vadd.xlane.f32.xlu0 %v454
    %v513 = vpop.xlane.xlu0 %512
    %514 = vadd.xlane.f32.xlu0 %v455
    %v515 = vpop.xlane.xlu0 %514
    %516 = vadd.xlane.f32.xlu0 %v456
    %v517 = vpop.xlane.xlu0 %516
    %518 = vadd.xlane.f32.xlu0 %v457
    %v519 = vpop.xlane.xlu0 %518
    %520 = vadd.xlane.f32.xlu0 %v458
    %v521 = vpop.xlane.xlu0 %520
    %522 = vadd.xlane.f32.xlu0 %v459
    %v523 = vpop.xlane.xlu0 %522
    %v556 = vadd.s32 %v117, 4294967264
    %v557 = vlaneseq
    %v558 = vshrl.u32 %v557, 7
    %v559 = vsub.s32 %v556, %v558
    %v560 = vrot.slane %v461, %v559
    %v561 = vadd.s32 %v117, 4294967256
    %v562 = vlaneseq
    %v563 = vshrl.u32 %v562, 7
    %v564 = vsub.s32 %v561, %v563
    %v565 = vrot.slane %v463, %v564
    %vm566 = vcmask 392512
    %v567 = vsel %vm566, %v565, %v560
    %v568 = vadd.s32 %v117, 4294967248
    %v569 = vlaneseq
    %v570 = vshrl.u32 %v569, 7
    %v571 = vsub.s32 %v568, %v570
    %v572 = vrot.slane %v465, %v571
    %vm573 = vcmask 458112
    %v574 = vsel %vm573, %v572, %v567
    %v575 = vadd.s32 %v117, 4294967240
    %v576 = vlaneseq
    %v577 = vshrl.u32 %v576, 7
    %v578 = vsub.s32 %v575, %v577
    %v579 = vrot.slane %v467, %v578
    %vm580 = vcmask 523712
    %v581 = vsel %vm580, %v579, %v574
    %v582 = vlaneseq
    %v583 = vshrl.u32 %v582, 7
    %v584 = vsub.s32 %v556, %v583
    %v585 = vrot.slane %v469, %v584
    %v586 = vlaneseq
    %v587 = vshrl.u32 %v586, 7
    %v588 = vsub.s32 %v561, %v587
    %v589 = vrot.slane %v471, %v588
    %v590 = vsel %vm566, %v589, %v585
    %v591 = vlaneseq
    %v592 = vshrl.u32 %v591, 7
    %v593 = vsub.s32 %v568, %v592
    %v594 = vrot.slane %v473, %v593
    %v595 = vsel %vm573, %v594, %v590
    %v596 = vlaneseq
    %v597 = vshrl.u32 %v596, 7
    %v598 = vsub.s32 %v575, %v597
    %v599 = vrot.slane %v475, %v598
    %v600 = vsel %vm580, %v599, %v595
    %v601 = vlaneseq
    %v602 = vshrl.u32 %v601, 7
    %v603 = vsub.s32 %v556, %v602
    %v604 = vrot.slane %v477, %v603
    %v605 = vlaneseq
    %v606 = vshrl.u32 %v605, 7
    %v607 = vsub.s32 %v561, %v606
    %v608 = vrot.slane %v479, %v607
    %v609 = vsel %vm566, %v608, %v604
    %v610 = vlaneseq
    %v611 = vshrl.u32 %v610, 7
    %v612 = vsub.s32 %v568, %v611
    %v613 = vrot.slane %v481, %v612
    %v614 = vsel %vm573, %v613, %v609
    %v615 = vlaneseq
    %v616 = vshrl.u32 %v615, 7
    %v617 = vsub.s32 %v575, %v616
    %v618 = vrot.slane %v483, %v617
    %v619 = vsel %vm580, %v618, %v614
    %v620 = vlaneseq
    %v621 = vshrl.u32 %v620, 7
    %v622 = vsub.s32 %v556, %v621
    %v623 = vrot.slane %v485, %v622
    %v624 = vlaneseq
    %v625 = vshrl.u32 %v624, 7
    %v626 = vsub.s32 %v561, %v625
    %v627 = vrot.slane %v487, %v626
    %v628 = vsel %vm566, %v627, %v623
    %v629 = vlaneseq
    %v630 = vshrl.u32 %v629, 7
    %v631 = vsub.s32 %v568, %v630
    %v632 = vrot.slane %v489, %v631
    %v633 = vsel %vm573, %v632, %v628
    %v634 = vlaneseq
    %v635 = vshrl.u32 %v634, 7
    %v636 = vsub.s32 %v575, %v635
    %v637 = vrot.slane %v491, %v636
    %v638 = vsel %vm580, %v637, %v633
    %v639 = vlaneseq
    %v640 = vshrl.u32 %v639, 7
    %v641 = vsub.s32 %v556, %v640
    %v642 = vrot.slane %v493, %v641
    %v643 = vlaneseq
    %v644 = vshrl.u32 %v643, 7
    %v645 = vsub.s32 %v561, %v644
    %v646 = vrot.slane %v495, %v645
    %v647 = vsel %vm566, %v646, %v642
    %v648 = vlaneseq
    %v649 = vshrl.u32 %v648, 7
    %v650 = vsub.s32 %v568, %v649
    %v651 = vrot.slane %v497, %v650
    %v652 = vsel %vm573, %v651, %v647
    %v653 = vlaneseq
    %v654 = vshrl.u32 %v653, 7
    %v655 = vsub.s32 %v575, %v654
    %v656 = vrot.slane %v499, %v655
    %v657 = vsel %vm580, %v656, %v652
    %v658 = vlaneseq
    %v659 = vshrl.u32 %v658, 7
    %v660 = vsub.s32 %v556, %v659
    %v661 = vrot.slane %v501, %v660
    %v662 = vlaneseq
    %v663 = vshrl.u32 %v662, 7
    %v664 = vsub.s32 %v561, %v663
    %v665 = vrot.slane %v503, %v664
    %v666 = vsel %vm566, %v665, %v661
    %v667 = vlaneseq
    %v668 = vshrl.u32 %v667, 7
    %v669 = vsub.s32 %v568, %v668
    %v670 = vrot.slane %v505, %v669
    %v671 = vsel %vm573, %v670, %v666
    %v672 = vlaneseq
    %v673 = vshrl.u32 %v672, 7
    %v674 = vsub.s32 %v575, %v673
    %v675 = vrot.slane %v507, %v674
    %v676 = vsel %vm580, %v675, %v671
    %v677 = vlaneseq
    %v678 = vshrl.u32 %v677, 7
    %v679 = vsub.s32 %v556, %v678
    %v680 = vrot.slane %v509, %v679
    %v681 = vlaneseq
    %v682 = vshrl.u32 %v681, 7
    %v683 = vsub.s32 %v561, %v682
    %v684 = vrot.slane %v511, %v683
    %v685 = vsel %vm566, %v684, %v680
    %v686 = vlaneseq
    %v687 = vshrl.u32 %v686, 7
    %v688 = vsub.s32 %v568, %v687
    %v689 = vrot.slane %v513, %v688
    %v690 = vsel %vm573, %v689, %v685
    %v691 = vlaneseq
    %v692 = vshrl.u32 %v691, 7
    %v693 = vsub.s32 %v575, %v692
    %v694 = vrot.slane %v515, %v693
    %v695 = vsel %vm580, %v694, %v690
    %v696 = vlaneseq
    %v697 = vshrl.u32 %v696, 7
    %v698 = vsub.s32 %v556, %v697
    %v699 = vrot.slane %v517, %v698
    %v700 = vlaneseq
    %v701 = vshrl.u32 %v700, 7
    %v702 = vsub.s32 %v561, %v701
    %v703 = vrot.slane %v519, %v702
    %v704 = vsel %vm566, %v703, %v699
    %v705 = vlaneseq
    %v706 = vshrl.u32 %v705, 7
    %v707 = vsub.s32 %v568, %v706
    %v708 = vrot.slane %v521, %v707
    %v709 = vsel %vm573, %v708, %v704
    %v710 = vlaneseq
    %v711 = vshrl.u32 %v710, 7
    %v712 = vsub.s32 %v575, %v711
    %v713 = vrot.slane %v523, %v712
    %v714 = vsel %vm580, %v713, %v709
    %vm715 = vcmask 1041409
    %v716 = vsel %vm715, %v600, %v581
    %vm717 = vcmask 1042434
    %v718 = vsel %vm717, %v619, %v716
    %vm719 = vcmask 1043459
    %v720 = vsel %vm719, %v638, %v718
    %vm721 = vcmask 1044484
    %v722 = vsel %vm721, %v657, %v720
    %vm723 = vcmask 1045509
    %v724 = vsel %vm723, %v676, %v722
    %vm725 = vcmask 1046534
    %v726 = vsel %vm725, %v695, %v724
    %vm727 = vcmask 1047559
    %v728 = vsel %vm727, %v714, %v726
    %v730 = vsel %vm210, %v203, %v728
    %v731 = vld [vmem:[%s5] sm:$0xff]
    %v732 = vld [vmem:[%s5 + $0x8] sm:$0xff]
    %v733 = vld [vmem:[%s5 + $0x10] sm:$0xff]
    %v734 = vld [vmem:[%s5 + $0x18] sm:$0xff]
    %v735 = vld [vmem:[%s5 + $0x20] sm:$0xff]
    %v736 = vld [vmem:[%s5 + $0x28] sm:$0xff]
    %v737 = vld [vmem:[%s5 + $0x30] sm:$0xff]
    %v738 = vld [vmem:[%s5 + $0x38] sm:$0xff]
    %v739 = vlaneseq
    %v740 = vshrl.u32 %v739, 7
    %v741 = vsub.s32 0, %v740
    %v742 = vrot.slane %v113, %v741
    %v744 = vsel %vm132, %v730, 0
    %746 = vmatprep.subr.mxu0 0.0
    %747 = vmatpush1.msra.mxu0 0.0
    %748 = vmatprep.subr.mxu0 0.0
    %749 = vmatpush1.msra.mxu0 0.0
    %750 = vmatprep.subr.mxu0 0.0
    %751 = vmatpush1.msra.mxu0 0.0
    %752 = vmatprep.subr.mxu0 0.0
    %753 = vmatpush1.msra.mxu0 0.0
    %754 = vmatprep.subr.mxu0 0.0
    %755 = vmatpush1.msra.mxu0 0.0
    %756 = vmatprep.subr.mxu0 0.0
    %757 = vmatpush1.msra.mxu0 0.0
    %758 = vmatprep.subr.mxu0 0.0
    %759 = vmatpush1.msra.mxu0 0.0
    %760 = vmatprep.subr.mxu0 0.0
    %761 = vmatpush1.msra.mxu0 0.0
    %762 = vmatprep.subr.mxu0 0.0
    %763 = vmatpush1.msra.mxu0 %v738
    %764 = vmatprep.subr.mxu0 0.0
    %765 = vmatpush1.msra.mxu0 %v737
    %766 = vmatprep.subr.mxu0 0.0
    %767 = vmatpush1.msra.mxu0 %v736
    %768 = vmatprep.subr.mxu0 0.0
    %769 = vmatpush1.msra.mxu0 %v735
    %770 = vmatprep.subr.mxu0 0.0
    %771 = vmatpush1.msra.mxu0 %v734
    %772 = vmatprep.subr.mxu0 0.0
    %773 = vmatpush1.msra.mxu0 %v733
    %774 = vmatprep.subr.mxu0 0.0
    %775 = vmatpush1.msra.mxu0 %v732
    %776 = vmatprep.subr.mxu0 0.0
    %777 = vmatpush1.msra.mxu0 %v731
    %778 = vmatprep.subr.mxu0 0.0
    %779 = vmatpush2.msra.mxu0 0.0
    %780 = vmatprep.subr.mxu0 0.0
    %781 = vmatpush2.msra.mxu0 0.0
    %782 = vmatprep.subr.mxu0 0.0
    %783 = vmatpush2.msra.mxu0 0.0
    %784 = vmatprep.subr.mxu0 0.0
    %785 = vmatpush2.msra.mxu0 0.0
    %786 = vmatprep.subr.mxu0 0.0
    %787 = vmatpush2.msra.mxu0 0.0
    %788 = vmatprep.subr.mxu0 0.0
    %789 = vmatpush2.msra.mxu0 0.0
    %790 = vmatprep.subr.mxu0 0.0
    %791 = vmatpush2.msra.mxu0 0.0
    %792 = vmatprep.subr.mxu0 0.0
    %793 = vmatpush2.msra.mxu0 0.0
    %794 = vmatprep.subr.mxu0 0.0
    %795 = vmatpush2.msra.mxu0 0.0
    %796 = vmatprep.subr.mxu0 0.0
    %797 = vmatpush2.msra.mxu0 0.0
    %798 = vmatprep.subr.mxu0 0.0
    %799 = vmatpush2.msra.mxu0 0.0
    %800 = vmatprep.subr.mxu0 0.0
    %801 = vmatpush2.msra.mxu0 0.0
    %802 = vmatprep.subr.mxu0 0.0
    %803 = vmatpush2.msra.mxu0 0.0
    %804 = vmatprep.subr.mxu0 0.0
    %805 = vmatpush2.msra.mxu0 0.0
    %806 = vmatprep.subr.mxu0 0.0
    %807 = vmatpush2.msra.mxu0 0.0
    %808 = vmatprep.subr.mxu0 0.0
    %809 = vmatpush2.msra.mxu0 0.0
    %810 = vmatprep.mubr.f32.mxu0 0.0
    %811 = vmatmul.mubr.f32.gmra.mxu0 %v744
    %v812 = vpop.f32.mrf.mxu0
    %v813 = vadd.f32 %v742, %v812
    %v814 = vpop.f32.mrf.mxu0
    %815 = vdwg.mxu0
    %v816 = vmax.f32 %v813, 0.0
    %v817 = vld [vmem:[#allocation7] sm:$0xff]
    %v818 = vld [vmem:[#allocation7 + $0x8] sm:$0xff]
    %v819 = vld [vmem:[#allocation7 + $0x10] sm:$0xff]
    %v820 = vld [vmem:[#allocation7 + $0x18] sm:$0xff]
    %v821 = vld [vmem:[#allocation7 + $0x20] sm:$0xff]
    %v822 = vld [vmem:[#allocation7 + $0x28] sm:$0xff]
    %v823 = vld [vmem:[#allocation7 + $0x30] sm:$0xff]
    %v824 = vld [vmem:[#allocation7 + $0x38] sm:$0xff]
    %v825 = vld [vmem:[#allocation7 + $0x40] sm:$0xff]
    %v826 = vld [vmem:[#allocation7 + $0x48] sm:$0xff]
    %v827 = vld [vmem:[#allocation7 + $0x50] sm:$0xff]
    %v828 = vld [vmem:[#allocation7 + $0x58] sm:$0xff]
    %v829 = vld [vmem:[#allocation7 + $0x60] sm:$0xff]
    %v830 = vld [vmem:[#allocation7 + $0x68] sm:$0xff]
    %v831 = vld [vmem:[#allocation7 + $0x70] sm:$0xff]
    %v832 = vld [vmem:[#allocation7 + $0x78] sm:$0xff]
    %v833 = vld [vmem:[#allocation7 + $0x80] sm:$0xff]
    %v834 = vld [vmem:[#allocation7 + $0x88] sm:$0xff]
    %v835 = vld [vmem:[#allocation7 + $0x90] sm:$0xff]
    %v836 = vld [vmem:[#allocation7 + $0x98] sm:$0xff]
    %v837 = vld [vmem:[#allocation7 + $0xa0] sm:$0xff]
    %v838 = vld [vmem:[#allocation7 + $0xa8] sm:$0xff]
    %v839 = vld [vmem:[#allocation7 + $0xb0] sm:$0xff]
    %v840 = vld [vmem:[#allocation7 + $0xb8] sm:$0xff]
    %v842 = vsel %vm210, %v110, 0
    %844 = vmatprep.subr.mxu0 0.0
    %845 = vmatpush1.msra.mxu0 0.0
    %846 = vmatprep.subr.mxu0 0.0
    %847 = vmatpush1.msra.mxu0 0.0
    %848 = vmatprep.subr.mxu0 0.0
    %849 = vmatpush1.msra.mxu0 0.0
    %850 = vmatprep.subr.mxu0 0.0
    %851 = vmatpush1.msra.mxu0 0.0
    %852 = vmatprep.subr.mxu0 0.0
    %853 = vmatpush1.msra.mxu0 0.0
    %854 = vmatprep.subr.mxu0 0.0
    %855 = vmatpush1.msra.mxu0 0.0
    %856 = vmatprep.subr.mxu0 0.0
    %857 = vmatpush1.msra.mxu0 0.0
    %858 = vmatprep.subr.mxu0 0.0
    %859 = vmatpush1.msra.mxu0 0.0
    %860 = vmatprep.subr.mxu0 0.0
    %861 = vmatpush1.msra.mxu0 0.0
    %862 = vmatprep.subr.mxu0 0.0
    %863 = vmatpush1.msra.mxu0 0.0
    %864 = vmatprep.subr.mxu0 0.0
    %865 = vmatpush1.msra.mxu0 0.0
    %866 = vmatprep.subr.mxu0 0.0
    %867 = vmatpush1.msra.mxu0 0.0
    %868 = vmatprep.subr.mxu0 %v827
    %869 = vmatpush1.msra.mxu0 %v826
    %870 = vmatprep.subr.mxu0 %v824
    %871 = vmatpush1.msra.mxu0 %v823
    %872 = vmatprep.subr.mxu0 %v821
    %873 = vmatpush1.msra.mxu0 %v820
    %874 = vmatprep.subr.mxu0 %v818
    %875 = vmatpush1.msra.mxu0 %v817
    %876 = vmatprep.subr.mxu0 0.0
    %877 = vmatpush2.msra.mxu0 0.0
    %878 = vmatprep.subr.mxu0 0.0
    %879 = vmatpush2.msra.mxu0 0.0
    %880 = vmatprep.subr.mxu0 0.0
    %881 = vmatpush2.msra.mxu0 0.0
    %882 = vmatprep.subr.mxu0 0.0
    %883 = vmatpush2.msra.mxu0 0.0
    %884 = vmatprep.subr.mxu0 0.0
    %885 = vmatpush2.msra.mxu0 0.0
    %886 = vmatprep.subr.mxu0 0.0
    %887 = vmatpush2.msra.mxu0 0.0
    %888 = vmatprep.subr.mxu0 0.0
    %889 = vmatpush2.msra.mxu0 0.0
    %890 = vmatprep.subr.mxu0 0.0
    %891 = vmatpush2.msra.mxu0 0.0
    %892 = vmatprep.subr.mxu0 0.0
    %893 = vmatpush2.msra.mxu0 0.0
    %894 = vmatprep.subr.mxu0 0.0
    %895 = vmatpush2.msra.mxu0 0.0
    %896 = vmatprep.subr.mxu0 0.0
    %897 = vmatpush2.msra.mxu0 0.0
    %898 = vmatprep.subr.mxu0 0.0
    %899 = vmatpush2.msra.mxu0 0.0
    %900 = vmatprep.subr.mxu0 0.0
    %901 = vmatpush2.msra.mxu0 0.0
    %902 = vmatprep.subr.mxu0 0.0
    %903 = vmatpush2.msra.mxu0 0.0
    %904 = vmatprep.subr.mxu0 0.0
    %905 = vmatpush2.msra.mxu0 0.0
    %906 = vmatprep.subr.mxu0 0.0
    %907 = vmatpush2.msra.mxu0 0.0
    %908 = vmatprep.mubr.f32.mxu0 0.0
    %909 = vmatmul.mubr.f32.gmra.mxu0 %v842
    %v910 = vpop.f32.mrf.mxu0
    %v911 = vadd.f32 0.0, %v910
    %v912 = vpop.f32.mrf.mxu0
    %v913 = vadd.f32 0.0, %v912
    %914 = vdwg.mxu0
    %915 = vmatprep.subr.mxu0 0.0
    %916 = vmatpush1.msra.mxu0 0.0
    %917 = vmatprep.subr.mxu0 0.0
    %918 = vmatpush1.msra.mxu0 0.0
    %919 = vmatprep.subr.mxu0 0.0
    %920 = vmatpush1.msra.mxu0 0.0
    %921 = vmatprep.subr.mxu0 0.0
    %922 = vmatpush1.msra.mxu0 0.0
    %923 = vmatprep.subr.mxu0 0.0
    %924 = vmatpush1.msra.mxu0 0.0
    %925 = vmatprep.subr.mxu0 0.0
    %926 = vmatpush1.msra.mxu0 0.0
    %927 = vmatprep.subr.mxu0 0.0
    %928 = vmatpush1.msra.mxu0 0.0
    %929 = vmatprep.subr.mxu0 0.0
    %930 = vmatpush1.msra.mxu0 0.0
    %931 = vmatprep.subr.mxu0 0.0
    %932 = vmatpush1.msra.mxu0 0.0
    %933 = vmatprep.subr.mxu0 0.0
    %934 = vmatpush1.msra.mxu0 0.0
    %935 = vmatprep.subr.mxu0 0.0
    %936 = vmatpush1.msra.mxu0 0.0
    %937 = vmatprep.subr.mxu0 0.0
    %938 = vmatpush1.msra.mxu0 0.0
    %939 = vmatprep.subr.mxu0 0.0
    %940 = vmatpush1.msra.mxu0 %v828
    %941 = vmatprep.subr.mxu0 0.0
    %942 = vmatpush1.msra.mxu0 %v825
    %943 = vmatprep.subr.mxu0 0.0
    %944 = vmatpush1.msra.mxu0 %v822
    %945 = vmatprep.subr.mxu0 0.0
    %946 = vmatpush1.msra.mxu0 %v819
    %947 = vmatprep.subr.mxu0 0.0
    %948 = vmatpush2.msra.mxu0 0.0
    %949 = vmatprep.subr.mxu0 0.0
    %950 = vmatpush2.msra.mxu0 0.0
    %951 = vmatprep.subr.mxu0 0.0
    %952 = vmatpush2.msra.mxu0 0.0
    %953 = vmatprep.subr.mxu0 0.0
    %954 = vmatpush2.msra.mxu0 0.0
    %955 = vmatprep.subr.mxu0 0.0
    %956 = vmatpush2.msra.mxu0 0.0
    %957 = vmatprep.subr.mxu0 0.0
    %958 = vmatpush2.msra.mxu0 0.0
    %959 = vmatprep.subr.mxu0 0.0
    %960 = vmatpush2.msra.mxu0 0.0
    %961 = vmatprep.subr.mxu0 0.0
    %962 = vmatpush2.msra.mxu0 0.0
    %963 = vmatprep.subr.mxu0 0.0
    %964 = vmatpush2.msra.mxu0 0.0
    %965 = vmatprep.subr.mxu0 0.0
    %966 = vmatpush2.msra.mxu0 0.0
    %967 = vmatprep.subr.mxu0 0.0
    %968 = vmatpush2.msra.mxu0 0.0
    %969 = vmatprep.subr.mxu0 0.0
    %970 = vmatpush2.msra.mxu0 0.0
    %971 = vmatprep.subr.mxu0 0.0
    %972 = vmatpush2.msra.mxu0 0.0
    %973 = vmatprep.subr.mxu0 0.0
    %974 = vmatpush2.msra.mxu0 0.0
    %975 = vmatprep.subr.mxu0 0.0
    %976 = vmatpush2.msra.mxu0 0.0
    %977 = vmatprep.subr.mxu0 0.0
    %978 = vmatpush2.msra.mxu0 0.0
    %979 = vmatprep.mubr.f32.mxu0 0.0
    %980 = vmatmul.mubr.f32.gmra.mxu0 %v842
    %v981 = vpop.f32.mrf.mxu0
    %v982 = vadd.f32 0.0, %v981
    %v983 = vpop.f32.mrf.mxu0
    %984 = vdwg.mxu0
    %v985 = vsel %vm210, %v111, 0
    %987 = vmatprep.subr.mxu0 0.0
    %988 = vmatpush1.msra.mxu0 0.0
    %989 = vmatprep.subr.mxu0 0.0
    %990 = vmatpush1.msra.mxu0 0.0
    %991 = vmatprep.subr.mxu0 0.0
    %992 = vmatpush1.msra.mxu0 0.0
    %993 = vmatprep.subr.mxu0 0.0
    %994 = vmatpush1.msra.mxu0 0.0
    %995 = vmatprep.subr.mxu0 0.0
    %996 = vmatpush1.msra.mxu0 0.0
    %997 = vmatprep.subr.mxu0 0.0
    %998 = vmatpush1.msra.mxu0 0.0
    %999 = vmatprep.subr.mxu0 0.0
    %1000 = vmatpush1.msra.mxu0 0.0
    %1001 = vmatprep.subr.mxu0 0.0
    %1002 = vmatpush1.msra.mxu0 0.0
    %1003 = vmatprep.subr.mxu0 0.0
    %1004 = vmatpush1.msra.mxu0 0.0
    %1005 = vmatprep.subr.mxu0 0.0
    %1006 = vmatpush1.msra.mxu0 0.0
    %1007 = vmatprep.subr.mxu0 0.0
    %1008 = vmatpush1.msra.mxu0 0.0
    %1009 = vmatprep.subr.mxu0 0.0
    %1010 = vmatpush1.msra.mxu0 0.0
    %1011 = vmatprep.subr.mxu0 %v839
    %1012 = vmatpush1.msra.mxu0 %v838
    %1013 = vmatprep.subr.mxu0 %v836
    %1014 = vmatpush1.msra.mxu0 %v835
    %1015 = vmatprep.subr.mxu0 %v833
    %1016 = vmatpush1.msra.mxu0 %v832
    %1017 = vmatprep.subr.mxu0 %v830
    %1018 = vmatpush1.msra.mxu0 %v829
    %1019 = vmatprep.subr.mxu0 0.0
    %1020 = vmatpush2.msra.mxu0 0.0
    %1021 = vmatprep.subr.mxu0 0.0
    %1022 = vmatpush2.msra.mxu0 0.0
    %1023 = vmatprep.subr.mxu0 0.0
    %1024 = vmatpush2.msra.mxu0 0.0
    %1025 = vmatprep.subr.mxu0 0.0
    %1026 = vmatpush2.msra.mxu0 0.0
    %1027 = vmatprep.subr.mxu0 0.0
    %1028 = vmatpush2.msra.mxu0 0.0
    %1029 = vmatprep.subr.mxu0 0.0
    %1030 = vmatpush2.msra.mxu0 0.0
    %1031 = vmatprep.subr.mxu0 0.0
    %1032 = vmatpush2.msra.mxu0 0.0
    %1033 = vmatprep.subr.mxu0 0.0
    %1034 = vmatpush2.msra.mxu0 0.0
    %1035 = vmatprep.subr.mxu0 0.0
    %1036 = vmatpush2.msra.mxu0 0.0
    %1037 = vmatprep.subr.mxu0 0.0
    %1038 = vmatpush2.msra.mxu0 0.0
    %1039 = vmatprep.subr.mxu0 0.0
    %1040 = vmatpush2.msra.mxu0 0.0
    %1041 = vmatprep.subr.mxu0 0.0
    %1042 = vmatpush2.msra.mxu0 0.0
    %1043 = vmatprep.subr.mxu0 0.0
    %1044 = vmatpush2.msra.mxu0 0.0
    %1045 = vmatprep.subr.mxu0 0.0
    %1046 = vmatpush2.msra.mxu0 0.0
    %1047 = vmatprep.subr.mxu0 0.0
    %1048 = vmatpush2.msra.mxu0 0.0
    %1049 = vmatprep.subr.mxu0 0.0
    %1050 = vmatpush2.msra.mxu0 0.0
    %1051 = vmatprep.mubr.f32.mxu0 0.0
    %1052 = vmatmul.mubr.f32.gmra.mxu0 %v985
    %v1053 = vpop.f32.mrf.mxu0
    %v1054 = vadd.f32 0.0, %v1053
    %v1055 = vpop.f32.mrf.mxu0
    %v1056 = vadd.f32 0.0, %v1055
    %1057 = vdwg.mxu0
    %1058 = vmatprep.subr.mxu0 0.0
    %1059 = vmatpush1.msra.mxu0 0.0
    %1060 = vmatprep.subr.mxu0 0.0
    %1061 = vmatpush1.msra.mxu0 0.0
    %1062 = vmatprep.subr.mxu0 0.0
    %1063 = vmatpush1.msra.mxu0 0.0
    %1064 = vmatprep.subr.mxu0 0.0
    %1065 = vmatpush1.msra.mxu0 0.0
    %1066 = vmatprep.subr.mxu0 0.0
    %1067 = vmatpush1.msra.mxu0 0.0
    %1068 = vmatprep.subr.mxu0 0.0
    %1069 = vmatpush1.msra.mxu0 0.0
    %1070 = vmatprep.subr.mxu0 0.0
    %1071 = vmatpush1.msra.mxu0 0.0
    %1072 = vmatprep.subr.mxu0 0.0
    %1073 = vmatpush1.msra.mxu0 0.0
    %1074 = vmatprep.subr.mxu0 0.0
    %1075 = vmatpush1.msra.mxu0 0.0
    %1076 = vmatprep.subr.mxu0 0.0
    %1077 = vmatpush1.msra.mxu0 0.0
    %1078 = vmatprep.subr.mxu0 0.0
    %1079 = vmatpush1.msra.mxu0 0.0
    %1080 = vmatprep.subr.mxu0 0.0
    %1081 = vmatpush1.msra.mxu0 0.0
    %1082 = vmatprep.subr.mxu0 0.0
    %1083 = vmatpush1.msra.mxu0 %v840
    %1084 = vmatprep.subr.mxu0 0.0
    %1085 = vmatpush1.msra.mxu0 %v837
    %1086 = vmatprep.subr.mxu0 0.0
    %1087 = vmatpush1.msra.mxu0 %v834
    %1088 = vmatprep.subr.mxu0 0.0
    %1089 = vmatpush1.msra.mxu0 %v831
    %1090 = vmatprep.subr.mxu0 0.0
    %1091 = vmatpush2.msra.mxu0 0.0
    %1092 = vmatprep.subr.mxu0 0.0
    %1093 = vmatpush2.msra.mxu0 0.0
    %1094 = vmatprep.subr.mxu0 0.0
    %1095 = vmatpush2.msra.mxu0 0.0
    %1096 = vmatprep.subr.mxu0 0.0
    %1097 = vmatpush2.msra.mxu0 0.0
    %1098 = vmatprep.subr.mxu0 0.0
    %1099 = vmatpush2.msra.mxu0 0.0
    %1100 = vmatprep.subr.mxu0 0.0
    %1101 = vmatpush2.msra.mxu0 0.0
    %1102 = vmatprep.subr.mxu0 0.0
    %1103 = vmatpush2.msra.mxu0 0.0
    %1104 = vmatprep.subr.mxu0 0.0
    %1105 = vmatpush2.msra.mxu0 0.0
    %1106 = vmatprep.subr.mxu0 0.0
    %1107 = vmatpush2.msra.mxu0 0.0
    %1108 = vmatprep.subr.mxu0 0.0
    %1109 = vmatpush2.msra.mxu0 0.0
    %1110 = vmatprep.subr.mxu0 0.0
    %1111 = vmatpush2.msra.mxu0 0.0
    %1112 = vmatprep.subr.mxu0 0.0
    %1113 = vmatpush2.msra.mxu0 0.0
    %1114 = vmatprep.subr.mxu0 0.0
    %1115 = vmatpush2.msra.mxu0 0.0
    %1116 = vmatprep.subr.mxu0 0.0
    %1117 = vmatpush2.msra.mxu0 0.0
    %1118 = vmatprep.subr.mxu0 0.0
    %1119 = vmatpush2.msra.mxu0 0.0
    %1120 = vmatprep.subr.mxu0 0.0
    %1121 = vmatpush2.msra.mxu0 0.0
    %1122 = vmatprep.mubr.f32.mxu0 0.0
    %1123 = vmatmul.mubr.f32.gmra.mxu0 %v985
    %v1124 = vpop.f32.mrf.mxu0
    %v1125 = vadd.f32 0.0, %v1124
    %v1126 = vpop.f32.mrf.mxu0
    %1127 = vdwg.mxu0
    %v1128 = vld [vmem:[%s6] sm:$0xff]
    %v1129 = vld [vmem:[%s6 + $0x8] sm:$0xff]
    %v1130 = vld [vmem:[%s6 + $0x10] sm:$0xff]
    %v1131 = vld [vmem:[%s6 + $0x18] sm:$0xff]
    %v1132 = vld [vmem:[%s6 + $0x20] sm:$0xff]
    %v1133 = vld [vmem:[%s6 + $0x28] sm:$0xff]
    %v1134 = vld [vmem:[%s6 + $0x30] sm:$0xff]
    %v1135 = vld [vmem:[%s6 + $0x38] sm:$0xff]
    %v1136 = vld [vmem:[%s6 + $0x40] sm:$0xff]
    %v1137 = vld [vmem:[%s6 + $0x48] sm:$0xff]
    %v1138 = vld [vmem:[%s6 + $0x50] sm:$0xff]
    %v1139 = vld [vmem:[%s6 + $0x58] sm:$0xff]
    %v1140 = vld [vmem:[#allocation8] sm:$0x7]
    %v1142 = vlaneseq
    %v1143 = vshrl.u32 %v1142, 7
    %v1144 = vsub.s32 0, %v1143
    %v1145 = vrot.slane %v1140, %v1144
    %v1146 = vlaneseq
    %v1147 = vshrl.u32 %v1146, 7
    %v1148 = vsub.s32 1, %v1147
    %v1149 = vrot.slane %v1140, %v1148
    %v1150 = vlaneseq
    %v1151 = vshrl.u32 %v1150, 7
    %v1152 = vsub.s32 2, %v1151
    %v1153 = vrot.slane %v1140, %v1152
    %v1158 = vsel %vm210, %v816, 0
    %1160 = vmatprep.subr.mxu0 0.0
    %1161 = vmatpush1.msra.mxu0 0.0
    %1162 = vmatprep.subr.mxu0 0.0
    %1163 = vmatpush1.msra.mxu0 0.0
    %1164 = vmatprep.subr.mxu0 0.0
    %1165 = vmatpush1.msra.mxu0 0.0
    %1166 = vmatprep.subr.mxu0 0.0
    %1167 = vmatpush1.msra.mxu0 0.0
    %1168 = vmatprep.subr.mxu0 0.0
    %1169 = vmatpush1.msra.mxu0 0.0
    %1170 = vmatprep.subr.mxu0 0.0
    %1171 = vmatpush1.msra.mxu0 0.0
    %1172 = vmatprep.subr.mxu0 0.0
    %1173 = vmatpush1.msra.mxu0 0.0
    %1174 = vmatprep.subr.mxu0 0.0
    %1175 = vmatpush1.msra.mxu0 0.0
    %1176 = vmatprep.subr.mxu0 0.0
    %1177 = vmatpush1.msra.mxu0 0.0
    %1178 = vmatprep.subr.mxu0 0.0
    %1179 = vmatpush1.msra.mxu0 0.0
    %1180 = vmatprep.subr.mxu0 0.0
    %1181 = vmatpush1.msra.mxu0 0.0
    %1182 = vmatprep.subr.mxu0 0.0
    %1183 = vmatpush1.msra.mxu0 0.0
    %1184 = vmatprep.subr.mxu0 %v1138
    %1185 = vmatpush1.msra.mxu0 %v1137
    %1186 = vmatprep.subr.mxu0 %v1135
    %1187 = vmatpush1.msra.mxu0 %v1134
    %1188 = vmatprep.subr.mxu0 %v1132
    %1189 = vmatpush1.msra.mxu0 %v1131
    %1190 = vmatprep.subr.mxu0 %v1129
    %1191 = vmatpush1.msra.mxu0 %v1128
    %1192 = vmatprep.subr.mxu0 0.0
    %1193 = vmatpush2.msra.mxu0 0.0
    %1194 = vmatprep.subr.mxu0 0.0
    %1195 = vmatpush2.msra.mxu0 0.0
    %1196 = vmatprep.subr.mxu0 0.0
    %1197 = vmatpush2.msra.mxu0 0.0
    %1198 = vmatprep.subr.mxu0 0.0
    %1199 = vmatpush2.msra.mxu0 0.0
    %1200 = vmatprep.subr.mxu0 0.0
    %1201 = vmatpush2.msra.mxu0 0.0
    %1202 = vmatprep.subr.mxu0 0.0
    %1203 = vmatpush2.msra.mxu0 0.0
    %1204 = vmatprep.subr.mxu0 0.0
    %1205 = vmatpush2.msra.mxu0 0.0
    %1206 = vmatprep.subr.mxu0 0.0
    %1207 = vmatpush2.msra.mxu0 0.0
    %1208 = vmatprep.subr.mxu0 0.0
    %1209 = vmatpush2.msra.mxu0 0.0
    %1210 = vmatprep.subr.mxu0 0.0
    %1211 = vmatpush2.msra.mxu0 0.0
    %1212 = vmatprep.subr.mxu0 0.0
    %1213 = vmatpush2.msra.mxu0 0.0
    %1214 = vmatprep.subr.mxu0 0.0
    %1215 = vmatpush2.msra.mxu0 0.0
    %1216 = vmatprep.subr.mxu0 0.0
    %1217 = vmatpush2.msra.mxu0 0.0
    %1218 = vmatprep.subr.mxu0 0.0
    %1219 = vmatpush2.msra.mxu0 0.0
    %1220 = vmatprep.subr.mxu0 0.0
    %1221 = vmatpush2.msra.mxu0 0.0
    %1222 = vmatprep.subr.mxu0 0.0
    %1223 = vmatpush2.msra.mxu0 0.0
    %1224 = vmatprep.mubr.f32.mxu0 0.0
    %1225 = vmatmul.mubr.f32.gmra.mxu0 %v1158
    %v1226 = vpop.f32.mrf.mxu0
    %v1227 = vadd.f32 %v1145, %v1226
    %v1228 = vpop.f32.mrf.mxu0
    %v1229 = vadd.f32 %v1149, %v1228
    %1230 = vdwg.mxu0
    %1231 = vmatprep.subr.mxu0 0.0
    %1232 = vmatpush1.msra.mxu0 0.0
    %1233 = vmatprep.subr.mxu0 0.0
    %1234 = vmatpush1.msra.mxu0 0.0
    %1235 = vmatprep.subr.mxu0 0.0
    %1236 = vmatpush1.msra.mxu0 0.0
    %1237 = vmatprep.subr.mxu0 0.0
    %1238 = vmatpush1.msra.mxu0 0.0
    %1239 = vmatprep.subr.mxu0 0.0
    %1240 = vmatpush1.msra.mxu0 0.0
    %1241 = vmatprep.subr.mxu0 0.0
    %1242 = vmatpush1.msra.mxu0 0.0
    %1243 = vmatprep.subr.mxu0 0.0
    %1244 = vmatpush1.msra.mxu0 0.0
    %1245 = vmatprep.subr.mxu0 0.0
    %1246 = vmatpush1.msra.mxu0 0.0
    %1247 = vmatprep.subr.mxu0 0.0
    %1248 = vmatpush1.msra.mxu0 0.0
    %1249 = vmatprep.subr.mxu0 0.0
    %1250 = vmatpush1.msra.mxu0 0.0
    %1251 = vmatprep.subr.mxu0 0.0
    %1252 = vmatpush1.msra.mxu0 0.0
    %1253 = vmatprep.subr.mxu0 0.0
    %1254 = vmatpush1.msra.mxu0 0.0
    %1255 = vmatprep.subr.mxu0 0.0
    %1256 = vmatpush1.msra.mxu0 %v1139
    %1257 = vmatprep.subr.mxu0 0.0
    %1258 = vmatpush1.msra.mxu0 %v1136
    %1259 = vmatprep.subr.mxu0 0.0
    %1260 = vmatpush1.msra.mxu0 %v1133
    %1261 = vmatprep.subr.mxu0 0.0
    %1262 = vmatpush1.msra.mxu0 %v1130
    %1263 = vmatprep.subr.mxu0 0.0
    %1264 = vmatpush2.msra.mxu0 0.0
    %1265 = vmatprep.subr.mxu0 0.0
    %1266 = vmatpush2.msra.mxu0 0.0
    %1267 = vmatprep.subr.mxu0 0.0
    %1268 = vmatpush2.msra.mxu0 0.0
    %1269 = vmatprep.subr.mxu0 0.0
    %1270 = vmatpush2.msra.mxu0 0.0
    %1271 = vmatprep.subr.mxu0 0.0
    %1272 = vmatpush2.msra.mxu0 0.0
    %1273 = vmatprep.subr.mxu0 0.0
    %1274 = vmatpush2.msra.mxu0 0.0
    %1275 = vmatprep.subr.mxu0 0.0
    %1276 = vmatpush2.msra.mxu0 0.0
    %1277 = vmatprep.subr.mxu0 0.0
    %1278 = vmatpush2.msra.mxu0 0.0
    %1279 = vmatprep.subr.mxu0 0.0
    %1280 = vmatpush2.msra.mxu0 0.0
    %1281 = vmatprep.subr.mxu0 0.0
    %1282 = vmatpush2.msra.mxu0 0.0
    %1283 = vmatprep.subr.mxu0 0.0
    %1284 = vmatpush2.msra.mxu0 0.0
    %1285 = vmatprep.subr.mxu0 0.0
    %1286 = vmatpush2.msra.mxu0 0.0
    %1287 = vmatprep.subr.mxu0 0.0
    %1288 = vmatpush2.msra.mxu0 0.0
    %1289 = vmatprep.subr.mxu0 0.0
    %1290 = vmatpush2.msra.mxu0 0.0
    %1291 = vmatprep.subr.mxu0 0.0
    %1292 = vmatpush2.msra.mxu0 0.0
    %1293 = vmatprep.subr.mxu0 0.0
    %1294 = vmatpush2.msra.mxu0 0.0
    %1295 = vmatprep.mubr.f32.mxu0 0.0
    %1296 = vmatmul.mubr.f32.gmra.mxu0 %v1158
    %v1297 = vpop.f32.mrf.mxu0
    %v1298 = vadd.f32 %v1153, %v1297
    %v1299 = vpop.f32.mrf.mxu0
    %1300 = vdwg.mxu0
    %s1301 = scalar_lea.vmem [#allocation8], 3
    %v1302 = vld [vmem:[%s1301] sm:$0x7]
    %v1304 = vlaneseq
    %v1305 = vshrl.u32 %v1304, 7
    %v1306 = vsub.s32 0, %v1305
    %v1307 = vrot.slane %v1302, %v1306
    %v1308 = vlaneseq
    %v1309 = vshrl.u32 %v1308, 7
    %v1310 = vsub.s32 1, %v1309
    %v1311 = vrot.slane %v1302, %v1310
    %v1312 = vlaneseq
    %v1313 = vshrl.u32 %v1312, 7
    %v1314 = vsub.s32 2, %v1313
    %v1315 = vrot.slane %v1302, %v1314
    %v1319 = vadd.f32 %v911, %v1307
    %v1320 = vadd.f32 %v913, %v1311
    %v1321 = vadd.f32 %v982, %v1315
    %v1322 = vadd.f32 %v1227, %v1319
    %v1323 = vxor.u32 %v1322, 2147483648
    %v1324 = vmul.f32 %v1323, 1.442695
    %v1325 = vpow.pop %v1324
    %v1326 = vadd.f32 %v1325, 1.0
    %v1327 = vrcp.pop %v1326
    %v1328 = vmul.f32 1.0, %v1327
    %v1329 = vadd.f32 %v1229, %v1320
    %v1330 = vxor.u32 %v1329, 2147483648
    %v1331 = vmul.f32 %v1330, 1.442695
    %v1332 = vpow.pop %v1331
    %v1333 = vadd.f32 %v1332, 1.0
    %v1334 = vrcp.pop %v1333
    %v1335 = vmul.f32 1.0, %v1334
    %v1336 = vmul.f32 %v1328, %v1321
    %v1337 = vadd.f32 %v1298, %v1336
    %v1338 = vtanh.pop %v1337
    %v1339 = vsub.f32 1.0, %v1335
    %v1340 = vmul.f32 %v1339, %v1338
    %v1341 = vmul.f32 %v1335, %v110
    %v1342 = vadd.f32 %v1340, %v1341
    %s1343 = scalar_lea.vmem %s6, 96
    %v1344 = vld [vmem:[%s1343] sm:$0xff]
    %v1345 = vld [vmem:[%s1343 + $0x8] sm:$0xff]
    %v1346 = vld [vmem:[%s1343 + $0x10] sm:$0xff]
    %v1347 = vld [vmem:[%s1343 + $0x18] sm:$0xff]
    %v1348 = vld [vmem:[%s1343 + $0x20] sm:$0xff]
    %v1349 = vld [vmem:[%s1343 + $0x28] sm:$0xff]
    %v1350 = vld [vmem:[%s1343 + $0x30] sm:$0xff]
    %v1351 = vld [vmem:[%s1343 + $0x38] sm:$0xff]
    %v1352 = vld [vmem:[%s1343 + $0x40] sm:$0xff]
    %v1353 = vld [vmem:[%s1343 + $0x48] sm:$0xff]
    %v1354 = vld [vmem:[%s1343 + $0x50] sm:$0xff]
    %v1355 = vld [vmem:[%s1343 + $0x58] sm:$0xff]
    %s1356 = scalar_lea.vmem [#allocation8], 6
    %v1357 = vld [vmem:[%s1356] sm:$0x7]
    %v1359 = vlaneseq
    %v1360 = vshrl.u32 %v1359, 7
    %v1361 = vsub.s32 0, %v1360
    %v1362 = vrot.slane %v1357, %v1361
    %v1363 = vlaneseq
    %v1364 = vshrl.u32 %v1363, 7
    %v1365 = vsub.s32 1, %v1364
    %v1366 = vrot.slane %v1357, %v1365
    %v1367 = vlaneseq
    %v1368 = vshrl.u32 %v1367, 7
    %v1369 = vsub.s32 2, %v1368
    %v1370 = vrot.slane %v1357, %v1369
    %v1375 = vsel %vm210, %v1342, 0
    %1377 = vmatprep.subr.mxu0 0.0
    %1378 = vmatpush1.msra.mxu0 0.0
    %1379 = vmatprep.subr.mxu0 0.0
    %1380 = vmatpush1.msra.mxu0 0.0
    %1381 = vmatprep.subr.mxu0 0.0
    %1382 = vmatpush1.msra.mxu0 0.0
    %1383 = vmatprep.subr.mxu0 0.0
    %1384 = vmatpush1.msra.mxu0 0.0
    %1385 = vmatprep.subr.mxu0 0.0
    %1386 = vmatpush1.msra.mxu0 0.0
    %1387 = vmatprep.subr.mxu0 0.0
    %1388 = vmatpush1.msra.mxu0 0.0
    %1389 = vmatprep.subr.mxu0 0.0
    %1390 = vmatpush1.msra.mxu0 0.0
    %1391 = vmatprep.subr.mxu0 0.0
    %1392 = vmatpush1.msra.mxu0 0.0
    %1393 = vmatprep.subr.mxu0 0.0
    %1394 = vmatpush1.msra.mxu0 0.0
    %1395 = vmatprep.subr.mxu0 0.0
    %1396 = vmatpush1.msra.mxu0 0.0
    %1397 = vmatprep.subr.mxu0 0.0
    %1398 = vmatpush1.msra.mxu0 0.0
    %1399 = vmatprep.subr.mxu0 0.0
    %1400 = vmatpush1.msra.mxu0 0.0
    %1401 = vmatprep.subr.mxu0 %v1354
    %1402 = vmatpush1.msra.mxu0 %v1353
    %1403 = vmatprep.subr.mxu0 %v1351
    %1404 = vmatpush1.msra.mxu0 %v1350
    %1405 = vmatprep.subr.mxu0 %v1348
    %1406 = vmatpush1.msra.mxu0 %v1347
    %1407 = vmatprep.subr.mxu0 %v1345
    %1408 = vmatpush1.msra.mxu0 %v1344
    %1409 = vmatprep.subr.mxu0 0.0
    %1410 = vmatpush2.msra.mxu0 0.0
    %1411 = vmatprep.subr.mxu0 0.0
    %1412 = vmatpush2.msra.mxu0 0.0
    %1413 = vmatprep.subr.mxu0 0.0
    %1414 = vmatpush2.msra.mxu0 0.0
    %1415 = vmatprep.subr.mxu0 0.0
    %1416 = vmatpush2.msra.mxu0 0.0
    %1417 = vmatprep.subr.mxu0 0.0
    %1418 = vmatpush2.msra.mxu0 0.0
    %1419 = vmatprep.subr.mxu0 0.0
    %1420 = vmatpush2.msra.mxu0 0.0
    %1421 = vmatprep.subr.mxu0 0.0
    %1422 = vmatpush2.msra.mxu0 0.0
    %1423 = vmatprep.subr.mxu0 0.0
    %1424 = vmatpush2.msra.mxu0 0.0
    %1425 = vmatprep.subr.mxu0 0.0
    %1426 = vmatpush2.msra.mxu0 0.0
    %1427 = vmatprep.subr.mxu0 0.0
    %1428 = vmatpush2.msra.mxu0 0.0
    %1429 = vmatprep.subr.mxu0 0.0
    %1430 = vmatpush2.msra.mxu0 0.0
    %1431 = vmatprep.subr.mxu0 0.0
    %1432 = vmatpush2.msra.mxu0 0.0
    %1433 = vmatprep.subr.mxu0 0.0
    %1434 = vmatpush2.msra.mxu0 0.0
    %1435 = vmatprep.subr.mxu0 0.0
    %1436 = vmatpush2.msra.mxu0 0.0
    %1437 = vmatprep.subr.mxu0 0.0
    %1438 = vmatpush2.msra.mxu0 0.0
    %1439 = vmatprep.subr.mxu0 0.0
    %1440 = vmatpush2.msra.mxu0 0.0
    %1441 = vmatprep.mubr.f32.mxu0 0.0
    %1442 = vmatmul.mubr.f32.gmra.mxu0 %v1375
    %v1443 = vpop.f32.mrf.mxu0
    %v1444 = vadd.f32 %v1362, %v1443
    %v1445 = vpop.f32.mrf.mxu0
    %v1446 = vadd.f32 %v1366, %v1445
    %1447 = vdwg.mxu0
    %1448 = vmatprep.subr.mxu0 0.0
    %1449 = vmatpush1.msra.mxu0 0.0
    %1450 = vmatprep.subr.mxu0 0.0
    %1451 = vmatpush1.msra.mxu0 0.0
    %1452 = vmatprep.subr.mxu0 0.0
    %1453 = vmatpush1.msra.mxu0 0.0
    %1454 = vmatprep.subr.mxu0 0.0
    %1455 = vmatpush1.msra.mxu0 0.0
    %1456 = vmatprep.subr.mxu0 0.0
    %1457 = vmatpush1.msra.mxu0 0.0
    %1458 = vmatprep.subr.mxu0 0.0
    %1459 = vmatpush1.msra.mxu0 0.0
    %1460 = vmatprep.subr.mxu0 0.0
    %1461 = vmatpush1.msra.mxu0 0.0
    %1462 = vmatprep.subr.mxu0 0.0
    %1463 = vmatpush1.msra.mxu0 0.0
    %1464 = vmatprep.subr.mxu0 0.0
    %1465 = vmatpush1.msra.mxu0 0.0
    %1466 = vmatprep.subr.mxu0 0.0
    %1467 = vmatpush1.msra.mxu0 0.0
    %1468 = vmatprep.subr.mxu0 0.0
    %1469 = vmatpush1.msra.mxu0 0.0
    %1470 = vmatprep.subr.mxu0 0.0
    %1471 = vmatpush1.msra.mxu0 0.0
    %1472 = vmatprep.subr.mxu0 0.0
    %1473 = vmatpush1.msra.mxu0 %v1355
    %1474 = vmatprep.subr.mxu0 0.0
    %1475 = vmatpush1.msra.mxu0 %v1352
    %1476 = vmatprep.subr.mxu0 0.0
    %1477 = vmatpush1.msra.mxu0 %v1349
    %1478 = vmatprep.subr.mxu0 0.0
    %1479 = vmatpush1.msra.mxu0 %v1346
    %1480 = vmatprep.subr.mxu0 0.0
    %1481 = vmatpush2.msra.mxu0 0.0
    %1482 = vmatprep.subr.mxu0 0.0
    %1483 = vmatpush2.msra.mxu0 0.0
    %1484 = vmatprep.subr.mxu0 0.0
    %1485 = vmatpush2.msra.mxu0 0.0
    %1486 = vmatprep.subr.mxu0 0.0
    %1487 = vmatpush2.msra.mxu0 0.0
    %1488 = vmatprep.subr.mxu0 0.0
    %1489 = vmatpush2.msra.mxu0 0.0
    %1490 = vmatprep.subr.mxu0 0.0
    %1491 = vmatpush2.msra.mxu0 0.0
    %1492 = vmatprep.subr.mxu0 0.0
    %1493 = vmatpush2.msra.mxu0 0.0
    %1494 = vmatprep.subr.mxu0 0.0
    %1495 = vmatpush2.msra.mxu0 0.0
    %1496 = vmatprep.subr.mxu0 0.0
    %1497 = vmatpush2.msra.mxu0 0.0
    %1498 = vmatprep.subr.mxu0 0.0
    %1499 = vmatpush2.msra.mxu0 0.0
    %1500 = vmatprep.subr.mxu0 0.0
    %1501 = vmatpush2.msra.mxu0 0.0
    %1502 = vmatprep.subr.mxu0 0.0
    %1503 = vmatpush2.msra.mxu0 0.0
    %1504 = vmatprep.subr.mxu0 0.0
    %1505 = vmatpush2.msra.mxu0 0.0
    %1506 = vmatprep.subr.mxu0 0.0
    %1507 = vmatpush2.msra.mxu0 0.0
    %1508 = vmatprep.subr.mxu0 0.0
    %1509 = vmatpush2.msra.mxu0 0.0
    %1510 = vmatprep.subr.mxu0 0.0
    %1511 = vmatpush2.msra.mxu0 0.0
    %1512 = vmatprep.mubr.f32.mxu0 0.0
    %1513 = vmatmul.mubr.f32.gmra.mxu0 %v1375
    %v1514 = vpop.f32.mrf.mxu0
    %v1515 = vadd.f32 %v1370, %v1514
    %v1516 = vpop.f32.mrf.mxu0
    %1517 = vdwg.mxu0
    %s1518 = scalar_lea.vmem [#allocation8], 9
    %v1519 = vld [vmem:[%s1518] sm:$0x7]
    %v1521 = vlaneseq
    %v1522 = vshrl.u32 %v1521, 7
    %v1523 = vsub.s32 0, %v1522
    %v1524 = vrot.slane %v1519, %v1523
    %v1525 = vlaneseq
    %v1526 = vshrl.u32 %v1525, 7
    %v1527 = vsub.s32 1, %v1526
    %v1528 = vrot.slane %v1519, %v1527
    %v1529 = vlaneseq
    %v1530 = vshrl.u32 %v1529, 7
    %v1531 = vsub.s32 2, %v1530
    %v1532 = vrot.slane %v1519, %v1531
    %v1536 = vadd.f32 %v1054, %v1524
    %v1537 = vadd.f32 %v1056, %v1528
    %v1538 = vadd.f32 %v1125, %v1532
    %v1539 = vadd.f32 %v1444, %v1536
    %v1540 = vxor.u32 %v1539, 2147483648
    %v1541 = vmul.f32 %v1540, 1.442695
    %v1542 = vpow.pop %v1541
    %v1543 = vadd.f32 %v1542, 1.0
    %v1544 = vrcp.pop %v1543
    %v1545 = vmul.f32 1.0, %v1544
    %v1546 = vadd.f32 %v1446, %v1537
    %v1547 = vxor.u32 %v1546, 2147483648
    %v1548 = vmul.f32 %v1547, 1.442695
    %v1549 = vpow.pop %v1548
    %v1550 = vadd.f32 %v1549, 1.0
    %v1551 = vrcp.pop %v1550
    %v1552 = vmul.f32 1.0, %v1551
    %v1553 = vmul.f32 %v1545, %v1538
    %v1554 = vadd.f32 %v1515, %v1553
    %v1555 = vtanh.pop %v1554
    %v1556 = vsub.f32 1.0, %v1552
    %v1557 = vmul.f32 %v1556, %v1555
    %v1558 = vmul.f32 %v1552, %v111
    %v1559 = vadd.f32 %v1557, %v1558
    %1560 = vst.msk [vmem:[#allocation12] sm:$0xff] %vm210, %v1342
    %1561 = vst.msk [vmem:[#allocation12 + $0x8] sm:$0xff] %vm210, %v1559
    %v1562 = vld [vmem:[#allocation10] sm:$0xff]
    %v1563 = vld [vmem:[#allocation10 + $0x8] sm:$0xff]
    %v1564 = vld [vmem:[#allocation10 + $0x10] sm:$0xff]
    %v1565 = vld [vmem:[#allocation10 + $0x18] sm:$0xff]
    %v1566 = vlaneseq
    %v1567 = vshrl.u32 %v1566, 7
    %v1568 = vsub.s32 0, %v1567
    %v1569 = vrot.slane %v114, %v1568
    %v1571 = vsel %vm210, %v1559, 0
    %1573 = vmatprep.subr.mxu0 0.0
    %1574 = vmatpush1.msra.mxu0 0.0
    %1575 = vmatprep.subr.mxu0 0.0
    %1576 = vmatpush1.msra.mxu0 0.0
    %1577 = vmatprep.subr.mxu0 0.0
    %1578 = vmatpush1.msra.mxu0 0.0
    %1579 = vmatprep.subr.mxu0 0.0
    %1580 = vmatpush1.msra.mxu0 0.0
    %1581 = vmatprep.subr.mxu0 0.0
    %1582 = vmatpush1.msra.mxu0 0.0
    %1583 = vmatprep.subr.mxu0 0.0
    %1584 = vmatpush1.msra.mxu0 0.0
    %1585 = vmatprep.subr.mxu0 0.0
    %1586 = vmatpush1.msra.mxu0 0.0
    %1587 = vmatprep.subr.mxu0 0.0
    %1588 = vmatpush1.msra.mxu0 0.0
    %1589 = vmatprep.subr.mxu0 0.0
    %1590 = vmatpush1.msra.mxu0 0.0
    %1591 = vmatprep.subr.mxu0 0.0
    %1592 = vmatpush1.msra.mxu0 0.0
    %1593 = vmatprep.subr.mxu0 0.0
    %1594 = vmatpush1.msra.mxu0 0.0
    %1595 = vmatprep.subr.mxu0 0.0
    %1596 = vmatpush1.msra.mxu0 0.0
    %1597 = vmatprep.subr.mxu0 0.0
    %1598 = vmatpush1.msra.mxu0 %v1565
    %1599 = vmatprep.subr.mxu0 0.0
    %1600 = vmatpush1.msra.mxu0 %v1564
    %1601 = vmatprep.subr.mxu0 0.0
    %1602 = vmatpush1.msra.mxu0 %v1563
    %1603 = vmatprep.subr.mxu0 0.0
    %1604 = vmatpush1.msra.mxu0 %v1562
    %1605 = vmatprep.subr.mxu0 0.0
    %1606 = vmatpush2.msra.mxu0 0.0
    %1607 = vmatprep.subr.mxu0 0.0
    %1608 = vmatpush2.msra.mxu0 0.0
    %1609 = vmatprep.subr.mxu0 0.0
    %1610 = vmatpush2.msra.mxu0 0.0
    %1611 = vmatprep.subr.mxu0 0.0
    %1612 = vmatpush2.msra.mxu0 0.0
    %1613 = vmatprep.subr.mxu0 0.0
    %1614 = vmatpush2.msra.mxu0 0.0
    %1615 = vmatprep.subr.mxu0 0.0
    %1616 = vmatpush2.msra.mxu0 0.0
    %1617 = vmatprep.subr.mxu0 0.0
    %1618 = vmatpush2.msra.mxu0 0.0
    %1619 = vmatprep.subr.mxu0 0.0
    %1620 = vmatpush2.msra.mxu0 0.0
    %1621 = vmatprep.subr.mxu0 0.0
    %1622 = vmatpush2.msra.mxu0 0.0
    %1623 = vmatprep.subr.mxu0 0.0
    %1624 = vmatpush2.msra.mxu0 0.0
    %1625 = vmatprep.subr.mxu0 0.0
    %1626 = vmatpush2.msra.mxu0 0.0
    %1627 = vmatprep.subr.mxu0 0.0
    %1628 = vmatpush2.msra.mxu0 0.0
    %1629 = vmatprep.subr.mxu0 0.0
    %1630 = vmatpush2.msra.mxu0 0.0
    %1631 = vmatprep.subr.mxu0 0.0
    %1632 = vmatpush2.msra.mxu0 0.0
    %1633 = vmatprep.subr.mxu0 0.0
    %1634 = vmatpush2.msra.mxu0 0.0
    %1635 = vmatprep.subr.mxu0 0.0
    %1636 = vmatpush2.msra.mxu0 0.0
    %1637 = vmatprep.mubr.f32.mxu0 0.0
    %1638 = vmatmul.mubr.f32.gmra.mxu0 %v1571
    %v1639 = vpop.f32.mrf.mxu0
    %v1640 = vadd.f32 %v1569, %v1639
    %v1641 = vpop.f32.mrf.mxu0
    %1642 = vdwg.mxu0
    %1643 = vst [vmem:[#allocation11] sm:$0xff] %v1640
    // Predicated region
    $region66: #{step.1} parent=1 // pred_check
      _
    $region67: #{step.1} parent=1 // pred_check_branch
      %1645 = sbr.rel (0) target = $region69
    $region68: #{step.1} parent=1 // pred_region
      %s1647 = ssub.s32 128, 128
      %1648 = vsyncadd [#allocation4], %s1647
      %s1650 = sshll.u32 [#allocation11], 4
      %s1651 = int_to_ptr.vmem [resolvable:$true] %s1650
      %1653 = dma.vmem_to_hbm [thread:$0]  %s1651, 128, %s11, [#allocation4]
    $region69: #{step.1} parent=1 // pred_fallthru
      _
    // Predicated region
    $region70: #{step.1} parent=1 // pred_check
      _
    $region71: #{step.1} parent=1 // pred_check_branch
      %1655 = sbr.rel (0) target = $region73
    $region72: #{step.1} parent=1 // pred_region
      %s1657 = ssub.s32 256, 256
      %1658 = vsyncadd [#allocation13], %s1657
      %s1659 = sshll.u32 [#allocation12], 4
      %s1660 = int_to_ptr.vmem [resolvable:$true] %s1659
      %1665 = dma.vmem_to_hbm [thread:$0]  %s1660, 256, %s12, [#allocation13], 128, 128, 8
    $region73: #{step.1} parent=1 // pred_fallthru
      _
    // Predicated region
    $region74: #{step.1} parent=1 // pred_check
      _
    $region75: #{step.1} parent=1 // pred_check_branch
      %1667 = sbr.rel (0) target = $region77
    $region76: #{step.1} parent=1 // pred_region
      %1668 = dma.done [#allocation4], 128
    $region77: #{step.1} parent=1 // pred_fallthru
      _
    // Predicated region
    $region78: #{step.1} parent=1 // pred_check
      _
    $region79: #{step.1} parent=1 // pred_check_branch
      %1670 = sbr.rel (0) target = $region81
    $region80: #{step.1} parent=1 // pred_region
      %1671 = dma.done [#allocation13], 256
    $region81: #{step.1} parent=1 // pred_fallthru
      _
    %1672 = vsyncpa [#allocation3], 1
    %1673 = vsyncpa [#allocation6], 1
    %1674 = vsyncpa [#allocation9], 1
    %1675 = vsyncpa [#allocation4], 1
    %1676 = vsyncpa [#allocation13], 1

</llo_original>
